<compile_context>
chip_gen: v6e
topology: v6e:2x2x1
jax: 0.10.0
libtpu: 0.0.40
codegen_flags: <defaults>
</compile_context>

<pallas_src>
import functools

import numpy as np
import jax
import jax.numpy as jnp
from jax import lax
from jax.experimental import pallas as pl
from jax.experimental.pallas import tpu as pltpu

PHONES = ["a", "b", "c", "pad3", "e", "_", "f", "mask"]
MASK_IDX = PHONES.index("mask")   # initial decoder input
UND_IDX = PHONES.index("_")       # once produced, flag the batch element
KEEP_IDX = 3                      # F.one_hot(torch.tensor([3]), ...) keeps only index 3


def decoder_kernel(h0_ref, c0_ref, w_ih_ref, w_hh_ref, b_ref, w_lin_ref, b_lin_ref,
                   out_ref, *, T, H, V, mask_idx, und_idx, keep_idx):
    B = h0_ref.shape[0]
    H2 = 2 * H
    VPAD = out_ref.shape[-1]

    # --- hoisted loop-invariant loads / broadcasts --------------------------------
    w_ih = w_ih_ref[...]      # (1, 8H)  fused input weights, gate order [i|f|o|g]x[d0,d1]
    w_hh = w_hh_ref[...]      # (2H, 8H) block-diagonal fused recurrent weights
    b = b_ref[...]            # (1, 8H)  fused bias (b_ih + b_hh)
    w_lin = w_lin_ref[...]    # (2H, VPAD) zero-padded linear weight
    b_lin = b_lin_ref[...]    # (1, VPAD)  zero-padded linear bias

    col = lax.broadcasted_iota(jnp.int32, (B, VPAD), 1)
    valid = col < V
    neg = jnp.float32(-3.0e38)

    # --- recurrent state carried in registers -------------------------------------
    h_cat = h0_ref[...]                                   # (B, 2H)  [fwd | bwd]
    c_cat = c0_ref[...]                                   # (B, 2H)
    x = jnp.full((B, 1), float(mask_idx), jnp.float32)    # previous argmax (as float)
    flag = jnp.zeros((B, 1), jnp.bool_)                   # '_' already emitted?

    # --- statically unrolled greedy decode loop (T is small & static) -------------
    for t in range(T):
        # Both directional cells in one MXU push: (B,2H) @ (2H,8H).
        gates = (x * w_ih
                 + jnp.dot(h_cat, w_hh, preferred_element_type=jnp.float32)
                 + b)                                      # (B, 8H)
        i_g = jax.nn.sigmoid(gates[:, 0 * H2:1 * H2])
        f_g = jax.nn.sigmoid(gates[:, 1 * H2:2 * H2])
        o_g = jax.nn.sigmoid(gates[:, 2 * H2:3 * H2])
        g_g = jnp.tanh(gates[:, 3 * H2:4 * H2])
        c_cat = f_g * c_cat + i_g * g_g
        h_cat = o_g * jnp.tanh(c_cat)                      # (B, 2H) = concat(h_fwd, h_bwd)

        logits = jnp.dot(h_cat, w_lin,
                         preferred_element_type=jnp.float32) + b_lin   # (B, VPAD)

        # torch.argmax over the real vocab columns (first-max tie-break).
        maxv = jnp.max(jnp.where(valid, logits, neg), axis=-1, keepdims=True)
        amax = jnp.min(jnp.where(valid & (logits == maxv), col, VPAD),
                       axis=-1, keepdims=True)             # (B, 1) int32

        # Flag update + masking: once '_' was emitted, keep only logit at index 3.
        flag = jnp.logical_or(flag, amax == und_idx)
        masked = jnp.where(flag, jnp.where(col == keep_idx, logits, 0.0), logits)

        out_ref[t] = masked                                # VMEM store; one HBM DMA total
        x = amax.astype(jnp.float32)                       # pre-masking argmax feeds next step


def _fuse_params(w_ih, w_hh, bias, w_lin, b_lin, H, V, vpad):
    """Reorder/fuse LSTM weights (torch gate order [i,f,g,o]) into the kernel layout.

    Fused column order along 8H: [i | f | o | g], each gate block = [dir0 H, dir1 H].
    Recurrent weight is block-diagonal so one (B,2H)@(2H,8H) matmul computes both cells.
    Linear weight/bias are zero-padded to `vpad` lanes.
    """
    gate_order = (0, 1, 3, 2)   # i, f, o, g (indices into torch's [i, f, g, o])
    ih_parts, b_parts, hh_cols = [], [], []
    for g in gate_order:
        for d in range(2):
            sl = slice(g * H, (g + 1) * H)
            ih_parts.append(w_ih[d, sl])
            b_parts.append(bias[d, sl])
            blk = jnp.zeros((2 * H, H), w_hh.dtype)
            blk = blk.at[d * H:(d + 1) * H, :].set(w_hh[d, :, sl])
            hh_cols.append(blk)
    w_ih_f = jnp.concatenate(ih_parts).reshape(1, 8 * H)
    b_f = jnp.concatenate(b_parts).reshape(1, 8 * H)
    w_hh_f = jnp.concatenate(hh_cols, axis=1)              # (2H, 8H)
    w_lin_p = jnp.zeros((2 * H, vpad), w_lin.dtype).at[:, :V].set(w_lin)
    b_lin_p = jnp.zeros((1, vpad), b_lin.dtype).at[:, :V].set(b_lin)
    return w_ih_f, w_hh_f, b_f, w_lin_p, b_lin_p


def decoder_forward(state, decoder_output_length, batch_size, params):
    """Pallas equivalent of Decoder.forward. Returns (B, T, vocab_size) float32."""
    h0, c0 = state
    w_ih, w_hh, bias, w_lin, b_lin = params
    B = batch_size
    H = h0.shape[-1]
    V = w_lin.shape[-1]
    T = int(decoder_output_length)
    VPAD = max(128, ((V + 127) // 128) * 128)              # lane-dense output width

    w_ih_f, w_hh_f, b_f, w_lin_p, b_lin_p = _fuse_params(
        w_ih, w_hh, bias, w_lin, b_lin, H, V, VPAD)
    h0_cat = jnp.concatenate([h0[0], h0[1]], axis=-1)      # (B, 2H)
    c0_cat = jnp.concatenate([c0[0], c0[1]], axis=-1)      # (B, 2H)

    kernel = functools.partial(decoder_kernel, T=T, H=H, V=V,
                               mask_idx=MASK_IDX, und_idx=UND_IDX, keep_idx=KEEP_IDX)

    out = pl.pallas_call(
        kernel,
        out_shape=jax.ShapeDtypeStruct((T, B, VPAD), jnp.float32),
        grid_spec=pltpu.PrefetchScalarGridSpec(
            num_scalar_prefetch=0,
            grid=(1,),                                      # single invocation; loop in-kernel
            in_specs=[
                pl.BlockSpec((B, 2 * H), lambda i: (0, 0)),        # h0 (concat dirs)
                pl.BlockSpec((B, 2 * H), lambda i: (0, 0)),        # c0 (concat dirs)
                pl.BlockSpec((1, 8 * H), lambda i: (0, 0)),        # fused w_ih
                pl.BlockSpec((2 * H, 8 * H), lambda i: (0, 0)),    # fused block-diag w_hh
                pl.BlockSpec((1, 8 * H), lambda i: (0, 0)),        # fused bias
                pl.BlockSpec((2 * H, VPAD), lambda i: (0, 0)),     # padded linear weight
                pl.BlockSpec((1, VPAD), lambda i: (0, 0)),         # padded linear bias
            ],
            out_specs=pl.BlockSpec((T, B, VPAD), lambda i: (0, 0, 0)),
        ),
        compiler_params=pltpu.CompilerParams(dimension_semantics=("arbitrary",)),
    )(h0_cat, c0_cat, w_ih_f, w_hh_f, b_f, w_lin_p, b_lin_p)

    # (T, B, VPAD) -> (B, T, V), batch_first like torch.
    return jnp.transpose(out, (1, 0, 2))[:, :, :V]


def decoder_reference(state, decoder_output_length, batch_size, params):
    """Pure-JAX reference mirroring the PyTorch forward pass (unfused weights)."""
    h0, c0 = state
    w_ih, w_hh, b, w_lin, b_lin = params
    B = batch_size
    H = h0.shape[-1]
    V = w_lin.shape[-1]

    h = [h0[0], h0[1]]
    c = [c0[0], c0[1]]
    x = jnp.full((B, 1), float(MASK_IDX), jnp.float32)
    flag = jnp.zeros((B, 1), jnp.bool_)
    outs = []
    for _ in range(int(decoder_output_length)):
        h_dirs = []
        for d in range(2):
            gates = (x * w_ih[d:d + 1, :]
                     + jnp.dot(h[d], w_hh[d], preferred_element_type=jnp.float32)
                     + b[d:d + 1, :])
            i = jax.nn.sigmoid(gates[:, 0:H])
            f = jax.nn.sigmoid(gates[:, H:2 * H])
            g = jnp.tanh(gates[:, 2 * H:3 * H])
            o = jax.nn.sigmoid(gates[:, 3 * H:4 * H])
            c[d] = f * c[d] + i * g
            h[d] = o * jnp.tanh(c[d])
            h_dirs.append(h[d])
        logits = (jnp.dot(jnp.concatenate(h_dirs, -1), w_lin,
                          preferred_element_type=jnp.float32) + b_lin)
        amax = jnp.argmax(logits, axis=-1, keepdims=True)
        flag = jnp.logical_or(flag, amax == UND_IDX)
        keep = (jnp.arange(V)[None, :] == KEEP_IDX)
        masked = jnp.where(flag, jnp.where(keep, logits, 0.0), logits)
        outs.append(masked)
        x = amax.astype(jnp.float32)
    return jnp.stack(outs, axis=1)   # (B, T, V)


if __name__ == "__main__":
    B, H = 2, 32
    V = len(PHONES)              # vocab_size == len(phones) == 8
    T = 6                        # decoder_output_length

    key = jax.random.PRNGKey(0)
    ks = jax.random.split(key, 8)
    s = 1.0 / np.sqrt(H)
    sl = 1.0 / np.sqrt(2 * H)
    # nn.LSTM(1, H, bidirectional) weights: weight_ih (4H, 1) stored squeezed as (4H,),
    # gate column order [i, f, g, o] (torch convention).
    w_ih = jax.random.uniform(ks[0], (2, 4 * H), jnp.float32, -s, s)
    w_hh = jax.random.uniform(ks[1], (2, H, 4 * H), jnp.float32, -s, s)
    b_ih = jax.random.uniform(ks[2], (2, 4 * H), jnp.float32, -s, s)
    b_hh = jax.random.uniform(ks[3], (2, 4 * H), jnp.float32, -s, s)
    bias = b_ih + b_hh
    w_lin = jax.random.uniform(ks[4], (2 * H, V), jnp.float32, -sl, sl)
    b_lin = jax.random.uniform(ks[5], (1, V), jnp.float32, -sl, sl)
    h0 = jax.random.normal(ks[6], (2, B, H), jnp.float32) * 0.5
    c0 = jax.random.normal(ks[7], (2, B, H), jnp.float32) * 0.5

    params = (w_ih, w_hh, bias, w_lin, b_lin)
    state = (h0, c0)

    out = decoder_forward(state, T, B, params)
    out = jax.block_until_ready(out)

    ref = decoder_reference(state, T, B, params)
    np.testing.assert_allclose(np.asarray(out), np.asarray(ref), rtol=2e-3, atol=2e-3)
    assert out.shape == (B, T, V) and out.dtype == jnp.float32

    print("KERNEL_OK")
</pallas_src>

<mosaic_0001>
module attributes {stable_mosaic.version = 11 : i64} {
  func.func @decoder_kernel(%arg0: i32, %arg1: memref<2x64xf32, #tpu.memory_space<vmem>>, %arg2: memref<2x64xf32, #tpu.memory_space<vmem>>, %arg3: memref<1x256xf32, #tpu.memory_space<vmem>>, %arg4: memref<64x256xf32, #tpu.memory_space<vmem>>, %arg5: memref<1x256xf32, #tpu.memory_space<vmem>>, %arg6: memref<64x128xf32, #tpu.memory_space<vmem>>, %arg7: memref<1x128xf32, #tpu.memory_space<vmem>>, %arg8: memref<6x2x128xf32, #tpu.memory_space<vmem>>) attributes {dimension_semantics = [#tpu.dimension_semantics<arbitrary>], iteration_bounds = array<i64: 1>, scalar_prefetch = 0 : i64, scratch_operands = 0 : i64, tpu.core_type = #tpu.core_type<tc>, window_params = [{pipeline_mode = #tpu.pipeline_mode<synchronous>, transform_indices = @transform_0, window_bounds = array<i64: 2, 64>}, {pipeline_mode = #tpu.pipeline_mode<synchronous>, transform_indices = @transform_1, window_bounds = array<i64: 2, 64>}, {pipeline_mode = #tpu.pipeline_mode<synchronous>, transform_indices = @transform_2, window_bounds = array<i64: 1, 256>}, {pipeline_mode = #tpu.pipeline_mode<synchronous>, transform_indices = @transform_3, window_bounds = array<i64: 64, 256>}, {pipeline_mode = #tpu.pipeline_mode<synchronous>, transform_indices = @transform_4, window_bounds = array<i64: 1, 256>}, {pipeline_mode = #tpu.pipeline_mode<synchronous>, transform_indices = @transform_5, window_bounds = array<i64: 64, 128>}, {pipeline_mode = #tpu.pipeline_mode<synchronous>, transform_indices = @transform_6, window_bounds = array<i64: 1, 128>}, {pipeline_mode = #tpu.pipeline_mode<synchronous>, transform_indices = @transform_7, window_bounds = array<i64: 6, 2, 128>}]} {
    %c0 = arith.constant 0 : index
    %c0_0 = arith.constant 0 : index
    %0 = vector.load %arg3[%c0, %c0_0] : memref<1x256xf32, #tpu.memory_space<vmem>>, vector<1x256xf32>
    %c0_1 = arith.constant 0 : index
    %c0_2 = arith.constant 0 : index
    %1 = vector.load %arg4[%c0_1, %c0_2] : memref<64x256xf32, #tpu.memory_space<vmem>>, vector<64x256xf32>
    %c0_3 = arith.constant 0 : index
    %c0_4 = arith.constant 0 : index
    %2 = vector.load %arg5[%c0_3, %c0_4] : memref<1x256xf32, #tpu.memory_space<vmem>>, vector<1x256xf32>
    %c0_5 = arith.constant 0 : index
    %c0_6 = arith.constant 0 : index
    %3 = vector.load %arg6[%c0_5, %c0_6] : memref<64x128xf32, #tpu.memory_space<vmem>>, vector<64x128xf32>
    %c0_7 = arith.constant 0 : index
    %c0_8 = arith.constant 0 : index
    %4 = vector.load %arg7[%c0_7, %c0_8] : memref<1x128xf32, #tpu.memory_space<vmem>>, vector<1x128xf32>
    %5 = tpu.iota {dimensions = array<i32: 1>} : vector<2x128xi32>
    %c8_i32 = arith.constant 8 : i32
    %6 = vector.broadcast %c8_i32 : i32 to vector<2x128xi32>
    %7 = arith.cmpi slt, %5, %6 : vector<2x128xi32>
    %c0_9 = arith.constant 0 : index
    %c0_10 = arith.constant 0 : index
    %8 = vector.load %arg1[%c0_9, %c0_10] : memref<2x64xf32, #tpu.memory_space<vmem>>, vector<2x64xf32>
    %c0_11 = arith.constant 0 : index
    %c0_12 = arith.constant 0 : index
    %9 = vector.load %arg2[%c0_11, %c0_12] : memref<2x64xf32, #tpu.memory_space<vmem>>, vector<2x64xf32>
    %cst = arith.constant 7.000000e+00 : f32
    %10 = vector.broadcast %cst : f32 to vector<2x1xf32>
    %false = arith.constant false
    %11 = vector.broadcast %false : i1 to vector<2x1xi1>
    %12 = vector.broadcast %10 : vector<2x1xf32> to vector<2x256xf32>
    %13 = vector.broadcast %0 : vector<1x256xf32> to vector<2x256xf32>
    %14 = arith.mulf %12, %13 : vector<2x256xf32>
    %cst_13 = arith.constant dense<0.000000e+00> : vector<2x256xf32>
    %15 = tpu.matmul %8, %1, %cst_13 {dimension_numbers = #tpu.dot_dimension_numbers<[1], [0], [0], [1], [0, 0, 1, 1], [], []>} : vector<2x64xf32>, vector<64x256xf32>, vector<2x256xf32> -> vector<2x256xf32>
    %16 = arith.addf %14, %15 : vector<2x256xf32>
    %17 = vector.broadcast %2 : vector<1x256xf32> to vector<2x256xf32>
    %18 = arith.addf %16, %17 : vector<2x256xf32>
    %19 = vector.extract_strided_slice %18 {offsets = [0, 0], sizes = [2, 64], strides = [1, 1]} : vector<2x256xf32> to vector<2x64xf32>
    %20 = arith.negf %19 : vector<2x64xf32>
    %21 = math.exp %20 : vector<2x64xf32>
    %cst_14 = arith.constant 1.000000e+00 : f32
    %22 = vector.broadcast %cst_14 : f32 to vector<2x64xf32>
    %23 = arith.addf %22, %21 : vector<2x64xf32>
    %24 = arith.divf %22, %23 : vector<2x64xf32>
    %25 = vector.extract_strided_slice %18 {offsets = [0, 64], sizes = [2, 64], strides = [1, 1]} : vector<2x256xf32> to vector<2x64xf32>
    %26 = arith.negf %25 : vector<2x64xf32>
    %27 = math.exp %26 : vector<2x64xf32>
    %cst_15 = arith.constant 1.000000e+00 : f32
    %28 = vector.broadcast %cst_15 : f32 to vector<2x64xf32>
    %29 = arith.addf %28, %27 : vector<2x64xf32>
    %30 = arith.divf %28, %29 : vector<2x64xf32>
    %31 = vector.extract_strided_slice %18 {offsets = [0, 128], sizes = [2, 64], strides = [1, 1]} : vector<2x256xf32> to vector<2x64xf32>
    %32 = arith.negf %31 : vector<2x64xf32>
    %33 = math.exp %32 : vector<2x64xf32>
    %cst_16 = arith.constant 1.000000e+00 : f32
    %34 = vector.broadcast %cst_16 : f32 to vector<2x64xf32>
    %35 = arith.addf %34, %33 : vector<2x64xf32>
    %36 = arith.divf %34, %35 : vector<2x64xf32>
    %37 = vector.extract_strided_slice %18 {offsets = [0, 192], sizes = [2, 64], strides = [1, 1]} : vector<2x256xf32> to vector<2x64xf32>
    %38 = math.tanh %37 : vector<2x64xf32>
    %39 = arith.mulf %30, %9 : vector<2x64xf32>
    %40 = arith.mulf %24, %38 : vector<2x64xf32>
    %41 = arith.addf %39, %40 : vector<2x64xf32>
    %42 = math.tanh %41 : vector<2x64xf32>
    %43 = arith.mulf %36, %42 : vector<2x64xf32>
    %cst_17 = arith.constant dense<0.000000e+00> : vector<2x128xf32>
    %44 = tpu.matmul %43, %3, %cst_17 {dimension_numbers = #tpu.dot_dimension_numbers<[1], [0], [0], [1], [0, 0, 1, 1], [], []>} : vector<2x64xf32>, vector<64x128xf32>, vector<2x128xf32> -> vector<2x128xf32>
    %45 = vector.broadcast %4 : vector<1x128xf32> to vector<2x128xf32>
    %46 = arith.addf %44, %45 : vector<2x128xf32>
    %cst_18 = arith.constant -3.000000e+38 : f32
    %47 = vector.broadcast %cst_18 : f32 to vector<2x128xf32>
    %48 = arith.select %7, %46, %47 : vector<2x128xi1>, vector<2x128xf32>
    %cst_19 = arith.constant dense<0xFF800000> : vector<2xf32>
    %49 = vector.multi_reduction <maximumf>, %48, %cst_19 [1] : vector<2x128xf32> to vector<2xf32>
    %50 = vector.shape_cast %49 : vector<2xf32> to vector<2x1xf32>
    %51 = vector.broadcast %50 : vector<2x1xf32> to vector<2x128xf32>
    %52 = arith.cmpf oeq, %46, %51 : vector<2x128xf32>
    %53 = arith.andi %7, %52 : vector<2x128xi1>
    %c128_i32 = arith.constant 128 : i32
    %54 = vector.broadcast %c128_i32 : i32 to vector<2x128xi32>
    %55 = arith.select %53, %5, %54 : vector<2x128xi1>, vector<2x128xi32>
    %cst_20 = arith.constant dense<2147483647> : vector<2xi32>
    %56 = vector.multi_reduction <minsi>, %55, %cst_20 [1] : vector<2x128xi32> to vector<2xi32>
    %57 = vector.shape_cast %56 : vector<2xi32> to vector<2x1xi32>
    %c5_i32 = arith.constant 5 : i32
    %58 = vector.broadcast %c5_i32 : i32 to vector<2x1xi32>
    %59 = arith.cmpi eq, %57, %58 : vector<2x1xi32>
    %60 = arith.ori %11, %59 : vector<2x1xi1>
    %c3_i32 = arith.constant 3 : i32
    %61 = vector.broadcast %c3_i32 : i32 to vector<2x128xi32>
    %62 = arith.cmpi eq, %5, %61 : vector<2x128xi32>
    %cst_21 = arith.constant 0.000000e+00 : f32
    %63 = vector.broadcast %cst_21 : f32 to vector<2x128xf32>
    %64 = arith.select %62, %46, %63 : vector<2x128xi1>, vector<2x128xf32>
    %65 = vector.shape_cast %60 : vector<2x1xi1> to vector<2x1xi1>
    %66 = vector.broadcast %65 : vector<2x1xi1> to vector<2x128xi1>
    %67 = arith.select %66, %64, %46 : vector<2x128xi1>, vector<2x128xf32>
    %c0_22 = arith.constant 0 : index
    %c0_23 = arith.constant 0 : index
    %c0_24 = arith.constant 0 : index
    %68 = vector.load %arg8[%c0_22, %c0_23, %c0_24] : memref<6x2x128xf32, #tpu.memory_space<vmem>>, vector<1x2x128xf32>
    %69 = vector.shape_cast %68 : vector<1x2x128xf32> to vector<2x128xf32>
    %70 = vector.shape_cast %67 : vector<2x128xf32> to vector<1x2x128xf32>
    tpu.vector_store %arg8[%c0_22, %c0_23, %c0_24], %70 {strides = array<i32>} : memref<6x2x128xf32, #tpu.memory_space<vmem>>, vector<1x2x128xf32>,
    %71 = arith.sitofp %57 : vector<2x1xi32> to vector<2x1xf32>
    %72 = vector.broadcast %71 : vector<2x1xf32> to vector<2x256xf32>
    %73 = vector.broadcast %0 : vector<1x256xf32> to vector<2x256xf32>
    %74 = arith.mulf %72, %73 : vector<2x256xf32>
    %cst_25 = arith.constant dense<0.000000e+00> : vector<2x256xf32>
    %75 = tpu.matmul %43, %1, %cst_25 {dimension_numbers = #tpu.dot_dimension_numbers<[1], [0], [0], [1], [0, 0, 1, 1], [], []>} : vector<2x64xf32>, vector<64x256xf32>, vector<2x256xf32> -> vector<2x256xf32>
    %76 = arith.addf %74, %75 : vector<2x256xf32>
    %77 = vector.broadcast %2 : vector<1x256xf32> to vector<2x256xf32>
    %78 = arith.addf %76, %77 : vector<2x256xf32>
    %79 = vector.extract_strided_slice %78 {offsets = [0, 0], sizes = [2, 64], strides = [1, 1]} : vector<2x256xf32> to vector<2x64xf32>
    %80 = arith.negf %79 : vector<2x64xf32>
    %81 = math.exp %80 : vector<2x64xf32>
    %cst_26 = arith.constant 1.000000e+00 : f32
    %82 = vector.broadcast %cst_26 : f32 to vector<2x64xf32>
    %83 = arith.addf %82, %81 : vector<2x64xf32>
    %84 = arith.divf %82, %83 : vector<2x64xf32>
    %85 = vector.extract_strided_slice %78 {offsets = [0, 64], sizes = [2, 64], strides = [1, 1]} : vector<2x256xf32> to vector<2x64xf32>
    %86 = arith.negf %85 : vector<2x64xf32>
    %87 = math.exp %86 : vector<2x64xf32>
    %cst_27 = arith.constant 1.000000e+00 : f32
    %88 = vector.broadcast %cst_27 : f32 to vector<2x64xf32>
    %89 = arith.addf %88, %87 : vector<2x64xf32>
    %90 = arith.divf %88, %89 : vector<2x64xf32>
    %91 = vector.extract_strided_slice %78 {offsets = [0, 128], sizes = [2, 64], strides = [1, 1]} : vector<2x256xf32> to vector<2x64xf32>
    %92 = arith.negf %91 : vector<2x64xf32>
    %93 = math.exp %92 : vector<2x64xf32>
    %cst_28 = arith.constant 1.000000e+00 : f32
    %94 = vector.broadcast %cst_28 : f32 to vector<2x64xf32>
    %95 = arith.addf %94, %93 : vector<2x64xf32>
    %96 = arith.divf %94, %95 : vector<2x64xf32>
    %97 = vector.extract_strided_slice %78 {offsets = [0, 192], sizes = [2, 64], strides = [1, 1]} : vector<2x256xf32> to vector<2x64xf32>
    %98 = math.tanh %97 : vector<2x64xf32>
    %99 = arith.mulf %90, %41 : vector<2x64xf32>
    %100 = arith.mulf %84, %98 : vector<2x64xf32>
    %101 = arith.addf %99, %100 : vector<2x64xf32>
    %102 = math.tanh %101 : vector<2x64xf32>
    %103 = arith.mulf %96, %102 : vector<2x64xf32>
    %cst_29 = arith.constant dense<0.000000e+00> : vector<2x128xf32>
    %104 = tpu.matmul %103, %3, %cst_29 {dimension_numbers = #tpu.dot_dimension_numbers<[1], [0], [0], [1], [0, 0, 1, 1], [], []>} : vector<2x64xf32>, vector<64x128xf32>, vector<2x128xf32> -> vector<2x128xf32>
    %105 = vector.broadcast %4 : vector<1x128xf32> to vector<2x128xf32>
    %106 = arith.addf %104, %105 : vector<2x128xf32>
    %cst_30 = arith.constant -3.000000e+38 : f32
    %107 = vector.broadcast %cst_30 : f32 to vector<2x128xf32>
    %108 = arith.select %7, %106, %107 : vector<2x128xi1>, vector<2x128xf32>
    %cst_31 = arith.constant dense<0xFF800000> : vector<2xf32>
    %109 = vector.multi_reduction <maximumf>, %108, %cst_31 [1] : vector<2x128xf32> to vector<2xf32>
    %110 = vector.shape_cast %109 : vector<2xf32> to vector<2x1xf32>
    %111 = vector.broadcast %110 : vector<2x1xf32> to vector<2x128xf32>
    %112 = arith.cmpf oeq, %106, %111 : vector<2x128xf32>
    %113 = arith.andi %7, %112 : vector<2x128xi1>
    %c128_i32_32 = arith.constant 128 : i32
    %114 = vector.broadcast %c128_i32_32 : i32 to vector<2x128xi32>
    %115 = arith.select %113, %5, %114 : vector<2x128xi1>, vector<2x128xi32>
    %cst_33 = arith.constant dense<2147483647> : vector<2xi32>
    %116 = vector.multi_reduction <minsi>, %115, %cst_33 [1] : vector<2x128xi32> to vector<2xi32>
    %117 = vector.shape_cast %116 : vector<2xi32> to vector<2x1xi32>
    %c5_i32_34 = arith.constant 5 : i32
    %118 = vector.broadcast %c5_i32_34 : i32 to vector<2x1xi32>
    %119 = arith.cmpi eq, %117, %118 : vector<2x1xi32>
    %120 = arith.ori %60, %119 : vector<2x1xi1>
    %c3_i32_35 = arith.constant 3 : i32
    %121 = vector.broadcast %c3_i32_35 : i32 to vector<2x128xi32>
    %122 = arith.cmpi eq, %5, %121 : vector<2x128xi32>
    %cst_36 = arith.constant 0.000000e+00 : f32
    %123 = vector.broadcast %cst_36 : f32 to vector<2x128xf32>
    %124 = arith.select %122, %106, %123 : vector<2x128xi1>, vector<2x128xf32>
    %125 = vector.shape_cast %120 : vector<2x1xi1> to vector<2x1xi1>
    %126 = vector.broadcast %125 : vector<2x1xi1> to vector<2x128xi1>
    %127 = arith.select %126, %124, %106 : vector<2x128xi1>, vector<2x128xf32>
    %c1 = arith.constant 1 : index
    %c0_37 = arith.constant 0 : index
    %c0_38 = arith.constant 0 : index
    %128 = vector.load %arg8[%c1, %c0_37, %c0_38] : memref<6x2x128xf32, #tpu.memory_space<vmem>>, vector<1x2x128xf32>
    %129 = vector.shape_cast %128 : vector<1x2x128xf32> to vector<2x128xf32>
    %130 = vector.shape_cast %127 : vector<2x128xf32> to vector<1x2x128xf32>
    tpu.vector_store %arg8[%c1, %c0_37, %c0_38], %130 {strides = array<i32>} : memref<6x2x128xf32, #tpu.memory_space<vmem>>, vector<1x2x128xf32>,
    %131 = arith.sitofp %117 : vector<2x1xi32> to vector<2x1xf32>
    %132 = vector.broadcast %131 : vector<2x1xf32> to vector<2x256xf32>
    %133 = vector.broadcast %0 : vector<1x256xf32> to vector<2x256xf32>
    %134 = arith.mulf %132, %133 : vector<2x256xf32>
    %cst_39 = arith.constant dense<0.000000e+00> : vector<2x256xf32>
    %135 = tpu.matmul %103, %1, %cst_39 {dimension_numbers = #tpu.dot_dimension_numbers<[1], [0], [0], [1], [0, 0, 1, 1], [], []>} : vector<2x64xf32>, vector<64x256xf32>, vector<2x256xf32> -> vector<2x256xf32>
    %136 = arith.addf %134, %135 : vector<2x256xf32>
    %137 = vector.broadcast %2 : vector<1x256xf32> to vector<2x256xf32>
    %138 = arith.addf %136, %137 : vector<2x256xf32>
    %139 = vector.extract_strided_slice %138 {offsets = [0, 0], sizes = [2, 64], strides = [1, 1]} : vector<2x256xf32> to vector<2x64xf32>
    %140 = arith.negf %139 : vector<2x64xf32>
    %141 = math.exp %140 : vector<2x64xf32>
    %cst_40 = arith.constant 1.000000e+00 : f32
    %142 = vector.broadcast %cst_40 : f32 to vector<2x64xf32>
    %143 = arith.addf %142, %141 : vector<2x64xf32>
    %144 = arith.divf %142, %143 : vector<2x64xf32>
    %145 = vector.extract_strided_slice %138 {offsets = [0, 64], sizes = [2, 64], strides = [1, 1]} : vector<2x256xf32> to vector<2x64xf32>
    %146 = arith.negf %145 : vector<2x64xf32>
    %147 = math.exp %146 : vector<2x64xf32>
    %cst_41 = arith.constant 1.000000e+00 : f32
    %148 = vector.broadcast %cst_41 : f32 to vector<2x64xf32>
    %149 = arith.addf %148, %147 : vector<2x64xf32>
    %150 = arith.divf %148, %149 : vector<2x64xf32>
    %151 = vector.extract_strided_slice %138 {offsets = [0, 128], sizes = [2, 64], strides = [1, 1]} : vector<2x256xf32> to vector<2x64xf32>
    %152 = arith.negf %151 : vector<2x64xf32>
    %153 = math.exp %152 : vector<2x64xf32>
    %cst_42 = arith.constant 1.000000e+00 : f32
    %154 = vector.broadcast %cst_42 : f32 to vector<2x64xf32>
    %155 = arith.addf %154, %153 : vector<2x64xf32>
    %156 = arith.divf %154, %155 : vector<2x64xf32>
    %157 = vector.extract_strided_slice %138 {offsets = [0, 192], sizes = [2, 64], strides = [1, 1]} : vector<2x256xf32> to vector<2x64xf32>
    %158 = math.tanh %157 : vector<2x64xf32>
    %159 = arith.mulf %150, %101 : vector<2x64xf32>
    %160 = arith.mulf %144, %158 : vector<2x64xf32>
    %161 = arith.addf %159, %160 : vector<2x64xf32>
    %162 = math.tanh %161 : vector<2x64xf32>
    %163 = arith.mulf %156, %162 : vector<2x64xf32>
    %cst_43 = arith.constant dense<0.000000e+00> : vector<2x128xf32>
    %164 = tpu.matmul %163, %3, %cst_43 {dimension_numbers = #tpu.dot_dimension_numbers<[1], [0], [0], [1], [0, 0, 1, 1], [], []>} : vector<2x64xf32>, vector<64x128xf32>, vector<2x128xf32> -> vector<2x128xf32>
    %165 = vector.broadcast %4 : vector<1x128xf32> to vector<2x128xf32>
    %166 = arith.addf %164, %165 : vector<2x128xf32>
    %cst_44 = arith.constant -3.000000e+38 : f32
    %167 = vector.broadcast %cst_44 : f32 to vector<2x128xf32>
    %168 = arith.select %7, %166, %167 : vector<2x128xi1>, vector<2x128xf32>
    %cst_45 = arith.constant dense<0xFF800000> : vector<2xf32>
    %169 = vector.multi_reduction <maximumf>, %168, %cst_45 [1] : vector<2x128xf32> to vector<2xf32>
    %170 = vector.shape_cast %169 : vector<2xf32> to vector<2x1xf32>
    %171 = vector.broadcast %170 : vector<2x1xf32> to vector<2x128xf32>
    %172 = arith.cmpf oeq, %166, %171 : vector<2x128xf32>
    %173 = arith.andi %7, %172 : vector<2x128xi1>
    %c128_i32_46 = arith.constant 128 : i32
    %174 = vector.broadcast %c128_i32_46 : i32 to vector<2x128xi32>
    %175 = arith.select %173, %5, %174 : vector<2x128xi1>, vector<2x128xi32>
    %cst_47 = arith.constant dense<2147483647> : vector<2xi32>
    %176 = vector.multi_reduction <minsi>, %175, %cst_47 [1] : vector<2x128xi32> to vector<2xi32>
    %177 = vector.shape_cast %176 : vector<2xi32> to vector<2x1xi32>
    %c5_i32_48 = arith.constant 5 : i32
    %178 = vector.broadcast %c5_i32_48 : i32 to vector<2x1xi32>
    %179 = arith.cmpi eq, %177, %178 : vector<2x1xi32>
    %180 = arith.ori %120, %179 : vector<2x1xi1>
    %c3_i32_49 = arith.constant 3 : i32
    %181 = vector.broadcast %c3_i32_49 : i32 to vector<2x128xi32>
    %182 = arith.cmpi eq, %5, %181 : vector<2x128xi32>
    %cst_50 = arith.constant 0.000000e+00 : f32
    %183 = vector.broadcast %cst_50 : f32 to vector<2x128xf32>
    %184 = arith.select %182, %166, %183 : vector<2x128xi1>, vector<2x128xf32>
    %185 = vector.shape_cast %180 : vector<2x1xi1> to vector<2x1xi1>
    %186 = vector.broadcast %185 : vector<2x1xi1> to vector<2x128xi1>
    %187 = arith.select %186, %184, %166 : vector<2x128xi1>, vector<2x128xf32>
    %c2 = arith.constant 2 : index
    %c0_51 = arith.constant 0 : index
    %c0_52 = arith.constant 0 : index
    %188 = vector.load %arg8[%c2, %c0_51, %c0_52] : memref<6x2x128xf32, #tpu.memory_space<vmem>>, vector<1x2x128xf32>
    %189 = vector.shape_cast %188 : vector<1x2x128xf32> to vector<2x128xf32>
    %190 = vector.shape_cast %187 : vector<2x128xf32> to vector<1x2x128xf32>
    tpu.vector_store %arg8[%c2, %c0_51, %c0_52], %190 {strides = array<i32>} : memref<6x2x128xf32, #tpu.memory_space<vmem>>, vector<1x2x128xf32>,
    %191 = arith.sitofp %177 : vector<2x1xi32> to vector<2x1xf32>
    %192 = vector.broadcast %191 : vector<2x1xf32> to vector<2x256xf32>
    %193 = vector.broadcast %0 : vector<1x256xf32> to vector<2x256xf32>
    %194 = arith.mulf %192, %193 : vector<2x256xf32>
    %cst_53 = arith.constant dense<0.000000e+00> : vector<2x256xf32>
    %195 = tpu.matmul %163, %1, %cst_53 {dimension_numbers = #tpu.dot_dimension_numbers<[1], [0], [0], [1], [0, 0, 1, 1], [], []>} : vector<2x64xf32>, vector<64x256xf32>, vector<2x256xf32> -> vector<2x256xf32>
    %196 = arith.addf %194, %195 : vector<2x256xf32>
    %197 = vector.broadcast %2 : vector<1x256xf32> to vector<2x256xf32>
    %198 = arith.addf %196, %197 : vector<2x256xf32>
    %199 = vector.extract_strided_slice %198 {offsets = [0, 0], sizes = [2, 64], strides = [1, 1]} : vector<2x256xf32> to vector<2x64xf32>
    %200 = arith.negf %199 : vector<2x64xf32>
    %201 = math.exp %200 : vector<2x64xf32>
    %cst_54 = arith.constant 1.000000e+00 : f32
    %202 = vector.broadcast %cst_54 : f32 to vector<2x64xf32>
    %203 = arith.addf %202, %201 : vector<2x64xf32>
    %204 = arith.divf %202, %203 : vector<2x64xf32>
    %205 = vector.extract_strided_slice %198 {offsets = [0, 64], sizes = [2, 64], strides = [1, 1]} : vector<2x256xf32> to vector<2x64xf32>
    %206 = arith.negf %205 : vector<2x64xf32>
    %207 = math.exp %206 : vector<2x64xf32>
    %cst_55 = arith.constant 1.000000e+00 : f32
    %208 = vector.broadcast %cst_55 : f32 to vector<2x64xf32>
    %209 = arith.addf %208, %207 : vector<2x64xf32>
    %210 = arith.divf %208, %209 : vector<2x64xf32>
    %211 = vector.extract_strided_slice %198 {offsets = [0, 128], sizes = [2, 64], strides = [1, 1]} : vector<2x256xf32> to vector<2x64xf32>
    %212 = arith.negf %211 : vector<2x64xf32>
    %213 = math.exp %212 : vector<2x64xf32>
    %cst_56 = arith.constant 1.000000e+00 : f32
    %214 = vector.broadcast %cst_56 : f32 to vector<2x64xf32>
    %215 = arith.addf %214, %213 : vector<2x64xf32>
    %216 = arith.divf %214, %215 : vector<2x64xf32>
    %217 = vector.extract_strided_slice %198 {offsets = [0, 192], sizes = [2, 64], strides = [1, 1]} : vector<2x256xf32> to vector<2x64xf32>
    %218 = math.tanh %217 : vector<2x64xf32>
    %219 = arith.mulf %210, %161 : vector<2x64xf32>
    %220 = arith.mulf %204, %218 : vector<2x64xf32>
    %221 = arith.addf %219, %220 : vector<2x64xf32>
    %222 = math.tanh %221 : vector<2x64xf32>
    %223 = arith.mulf %216, %222 : vector<2x64xf32>
    %cst_57 = arith.constant dense<0.000000e+00> : vector<2x128xf32>
    %224 = tpu.matmul %223, %3, %cst_57 {dimension_numbers = #tpu.dot_dimension_numbers<[1], [0], [0], [1], [0, 0, 1, 1], [], []>} : vector<2x64xf32>, vector<64x128xf32>, vector<2x128xf32> -> vector<2x128xf32>
    %225 = vector.broadcast %4 : vector<1x128xf32> to vector<2x128xf32>
    %226 = arith.addf %224, %225 : vector<2x128xf32>
    %cst_58 = arith.constant -3.000000e+38 : f32
    %227 = vector.broadcast %cst_58 : f32 to vector<2x128xf32>
    %228 = arith.select %7, %226, %227 : vector<2x128xi1>, vector<2x128xf32>
    %cst_59 = arith.constant dense<0xFF800000> : vector<2xf32>
    %229 = vector.multi_reduction <maximumf>, %228, %cst_59 [1] : vector<2x128xf32> to vector<2xf32>
    %230 = vector.shape_cast %229 : vector<2xf32> to vector<2x1xf32>
    %231 = vector.broadcast %230 : vector<2x1xf32> to vector<2x128xf32>
    %232 = arith.cmpf oeq, %226, %231 : vector<2x128xf32>
    %233 = arith.andi %7, %232 : vector<2x128xi1>
    %c128_i32_60 = arith.constant 128 : i32
    %234 = vector.broadcast %c128_i32_60 : i32 to vector<2x128xi32>
    %235 = arith.select %233, %5, %234 : vector<2x128xi1>, vector<2x128xi32>
    %cst_61 = arith.constant dense<2147483647> : vector<2xi32>
    %236 = vector.multi_reduction <minsi>, %235, %cst_61 [1] : vector<2x128xi32> to vector<2xi32>
    %237 = vector.shape_cast %236 : vector<2xi32> to vector<2x1xi32>
    %c5_i32_62 = arith.constant 5 : i32
    %238 = vector.broadcast %c5_i32_62 : i32 to vector<2x1xi32>
    %239 = arith.cmpi eq, %237, %238 : vector<2x1xi32>
    %240 = arith.ori %180, %239 : vector<2x1xi1>
    %c3_i32_63 = arith.constant 3 : i32
    %241 = vector.broadcast %c3_i32_63 : i32 to vector<2x128xi32>
    %242 = arith.cmpi eq, %5, %241 : vector<2x128xi32>
    %cst_64 = arith.constant 0.000000e+00 : f32
    %243 = vector.broadcast %cst_64 : f32 to vector<2x128xf32>
    %244 = arith.select %242, %226, %243 : vector<2x128xi1>, vector<2x128xf32>
    %245 = vector.shape_cast %240 : vector<2x1xi1> to vector<2x1xi1>
    %246 = vector.broadcast %245 : vector<2x1xi1> to vector<2x128xi1>
    %247 = arith.select %246, %244, %226 : vector<2x128xi1>, vector<2x128xf32>
    %c3 = arith.constant 3 : index
    %c0_65 = arith.constant 0 : index
    %c0_66 = arith.constant 0 : index
    %248 = vector.load %arg8[%c3, %c0_65, %c0_66] : memref<6x2x128xf32, #tpu.memory_space<vmem>>, vector<1x2x128xf32>
    %249 = vector.shape_cast %248 : vector<1x2x128xf32> to vector<2x128xf32>
    %250 = vector.shape_cast %247 : vector<2x128xf32> to vector<1x2x128xf32>
    tpu.vector_store %arg8[%c3, %c0_65, %c0_66], %250 {strides = array<i32>} : memref<6x2x128xf32, #tpu.memory_space<vmem>>, vector<1x2x128xf32>,
    %251 = arith.sitofp %237 : vector<2x1xi32> to vector<2x1xf32>
    %252 = vector.broadcast %251 : vector<2x1xf32> to vector<2x256xf32>
    %253 = vector.broadcast %0 : vector<1x256xf32> to vector<2x256xf32>
    %254 = arith.mulf %252, %253 : vector<2x256xf32>
    %cst_67 = arith.constant dense<0.000000e+00> : vector<2x256xf32>
    %255 = tpu.matmul %223, %1, %cst_67 {dimension_numbers = #tpu.dot_dimension_numbers<[1], [0], [0], [1], [0, 0, 1, 1], [], []>} : vector<2x64xf32>, vector<64x256xf32>, vector<2x256xf32> -> vector<2x256xf32>
    %256 = arith.addf %254, %255 : vector<2x256xf32>
    %257 = vector.broadcast %2 : vector<1x256xf32> to vector<2x256xf32>
    %258 = arith.addf %256, %257 : vector<2x256xf32>
    %259 = vector.extract_strided_slice %258 {offsets = [0, 0], sizes = [2, 64], strides = [1, 1]} : vector<2x256xf32> to vector<2x64xf32>
    %260 = arith.negf %259 : vector<2x64xf32>
    %261 = math.exp %260 : vector<2x64xf32>
    %cst_68 = arith.constant 1.000000e+00 : f32
    %262 = vector.broadcast %cst_68 : f32 to vector<2x64xf32>
    %263 = arith.addf %262, %261 : vector<2x64xf32>
    %264 = arith.divf %262, %263 : vector<2x64xf32>
    %265 = vector.extract_strided_slice %258 {offsets = [0, 64], sizes = [2, 64], strides = [1, 1]} : vector<2x256xf32> to vector<2x64xf32>
    %266 = arith.negf %265 : vector<2x64xf32>
    %267 = math.exp %266 : vector<2x64xf32>
    %cst_69 = arith.constant 1.000000e+00 : f32
    %268 = vector.broadcast %cst_69 : f32 to vector<2x64xf32>
    %269 = arith.addf %268, %267 : vector<2x64xf32>
    %270 = arith.divf %268, %269 : vector<2x64xf32>
    %271 = vector.extract_strided_slice %258 {offsets = [0, 128], sizes = [2, 64], strides = [1, 1]} : vector<2x256xf32> to vector<2x64xf32>
    %272 = arith.negf %271 : vector<2x64xf32>
    %273 = math.exp %272 : vector<2x64xf32>
    %cst_70 = arith.constant 1.000000e+00 : f32
    %274 = vector.broadcast %cst_70 : f32 to vector<2x64xf32>
    %275 = arith.addf %274, %273 : vector<2x64xf32>
    %276 = arith.divf %274, %275 : vector<2x64xf32>
    %277 = vector.extract_strided_slice %258 {offsets = [0, 192], sizes = [2, 64], strides = [1, 1]} : vector<2x256xf32> to vector<2x64xf32>
    %278 = math.tanh %277 : vector<2x64xf32>
    %279 = arith.mulf %270, %221 : vector<2x64xf32>
    %280 = arith.mulf %264, %278 : vector<2x64xf32>
    %281 = arith.addf %279, %280 : vector<2x64xf32>
    %282 = math.tanh %281 : vector<2x64xf32>
    %283 = arith.mulf %276, %282 : vector<2x64xf32>
    %cst_71 = arith.constant dense<0.000000e+00> : vector<2x128xf32>
    %284 = tpu.matmul %283, %3, %cst_71 {dimension_numbers = #tpu.dot_dimension_numbers<[1], [0], [0], [1], [0, 0, 1, 1], [], []>} : vector<2x64xf32>, vector<64x128xf32>, vector<2x128xf32> -> vector<2x128xf32>
    %285 = vector.broadcast %4 : vector<1x128xf32> to vector<2x128xf32>
    %286 = arith.addf %284, %285 : vector<2x128xf32>
    %cst_72 = arith.constant -3.000000e+38 : f32
    %287 = vector.broadcast %cst_72 : f32 to vector<2x128xf32>
    %288 = arith.select %7, %286, %287 : vector<2x128xi1>, vector<2x128xf32>
    %cst_73 = arith.constant dense<0xFF800000> : vector<2xf32>
    %289 = vector.multi_reduction <maximumf>, %288, %cst_73 [1] : vector<2x128xf32> to vector<2xf32>
    %290 = vector.shape_cast %289 : vector<2xf32> to vector<2x1xf32>
    %291 = vector.broadcast %290 : vector<2x1xf32> to vector<2x128xf32>
    %292 = arith.cmpf oeq, %286, %291 : vector<2x128xf32>
    %293 = arith.andi %7, %292 : vector<2x128xi1>
    %c128_i32_74 = arith.constant 128 : i32
    %294 = vector.broadcast %c128_i32_74 : i32 to vector<2x128xi32>
    %295 = arith.select %293, %5, %294 : vector<2x128xi1>, vector<2x128xi32>
    %cst_75 = arith.constant dense<2147483647> : vector<2xi32>
    %296 = vector.multi_reduction <minsi>, %295, %cst_75 [1] : vector<2x128xi32> to vector<2xi32>
    %297 = vector.shape_cast %296 : vector<2xi32> to vector<2x1xi32>
    %c5_i32_76 = arith.constant 5 : i32
    %298 = vector.broadcast %c5_i32_76 : i32 to vector<2x1xi32>
    %299 = arith.cmpi eq, %297, %298 : vector<2x1xi32>
    %300 = arith.ori %240, %299 : vector<2x1xi1>
    %c3_i32_77 = arith.constant 3 : i32
    %301 = vector.broadcast %c3_i32_77 : i32 to vector<2x128xi32>
    %302 = arith.cmpi eq, %5, %301 : vector<2x128xi32>
    %cst_78 = arith.constant 0.000000e+00 : f32
    %303 = vector.broadcast %cst_78 : f32 to vector<2x128xf32>
    %304 = arith.select %302, %286, %303 : vector<2x128xi1>, vector<2x128xf32>
    %305 = vector.shape_cast %300 : vector<2x1xi1> to vector<2x1xi1>
    %306 = vector.broadcast %305 : vector<2x1xi1> to vector<2x128xi1>
    %307 = arith.select %306, %304, %286 : vector<2x128xi1>, vector<2x128xf32>
    %c4 = arith.constant 4 : index
    %c0_79 = arith.constant 0 : index
    %c0_80 = arith.constant 0 : index
    %308 = vector.load %arg8[%c4, %c0_79, %c0_80] : memref<6x2x128xf32, #tpu.memory_space<vmem>>, vector<1x2x128xf32>
    %309 = vector.shape_cast %308 : vector<1x2x128xf32> to vector<2x128xf32>
    %310 = vector.shape_cast %307 : vector<2x128xf32> to vector<1x2x128xf32>
    tpu.vector_store %arg8[%c4, %c0_79, %c0_80], %310 {strides = array<i32>} : memref<6x2x128xf32, #tpu.memory_space<vmem>>, vector<1x2x128xf32>,
    %311 = arith.sitofp %297 : vector<2x1xi32> to vector<2x1xf32>
    %312 = vector.broadcast %311 : vector<2x1xf32> to vector<2x256xf32>
    %313 = vector.broadcast %0 : vector<1x256xf32> to vector<2x256xf32>
    %314 = arith.mulf %312, %313 : vector<2x256xf32>
    %cst_81 = arith.constant dense<0.000000e+00> : vector<2x256xf32>
    %315 = tpu.matmul %283, %1, %cst_81 {dimension_numbers = #tpu.dot_dimension_numbers<[1], [0], [0], [1], [0, 0, 1, 1], [], []>} : vector<2x64xf32>, vector<64x256xf32>, vector<2x256xf32> -> vector<2x256xf32>
    %316 = arith.addf %314, %315 : vector<2x256xf32>
    %317 = vector.broadcast %2 : vector<1x256xf32> to vector<2x256xf32>
    %318 = arith.addf %316, %317 : vector<2x256xf32>
    %319 = vector.extract_strided_slice %318 {offsets = [0, 0], sizes = [2, 64], strides = [1, 1]} : vector<2x256xf32> to vector<2x64xf32>
    %320 = arith.negf %319 : vector<2x64xf32>
    %321 = math.exp %320 : vector<2x64xf32>
    %cst_82 = arith.constant 1.000000e+00 : f32
    %322 = vector.broadcast %cst_82 : f32 to vector<2x64xf32>
    %323 = arith.addf %322, %321 : vector<2x64xf32>
    %324 = arith.divf %322, %323 : vector<2x64xf32>
    %325 = vector.extract_strided_slice %318 {offsets = [0, 64], sizes = [2, 64], strides = [1, 1]} : vector<2x256xf32> to vector<2x64xf32>
    %326 = arith.negf %325 : vector<2x64xf32>
    %327 = math.exp %326 : vector<2x64xf32>
    %cst_83 = arith.constant 1.000000e+00 : f32
    %328 = vector.broadcast %cst_83 : f32 to vector<2x64xf32>
    %329 = arith.addf %328, %327 : vector<2x64xf32>
    %330 = arith.divf %328, %329 : vector<2x64xf32>
    %331 = vector.extract_strided_slice %318 {offsets = [0, 128], sizes = [2, 64], strides = [1, 1]} : vector<2x256xf32> to vector<2x64xf32>
    %332 = arith.negf %331 : vector<2x64xf32>
    %333 = math.exp %332 : vector<2x64xf32>
    %cst_84 = arith.constant 1.000000e+00 : f32
    %334 = vector.broadcast %cst_84 : f32 to vector<2x64xf32>
    %335 = arith.addf %334, %333 : vector<2x64xf32>
    %336 = arith.divf %334, %335 : vector<2x64xf32>
    %337 = vector.extract_strided_slice %318 {offsets = [0, 192], sizes = [2, 64], strides = [1, 1]} : vector<2x256xf32> to vector<2x64xf32>
    %338 = math.tanh %337 : vector<2x64xf32>
    %339 = arith.mulf %330, %281 : vector<2x64xf32>
    %340 = arith.mulf %324, %338 : vector<2x64xf32>
    %341 = arith.addf %339, %340 : vector<2x64xf32>
    %342 = math.tanh %341 : vector<2x64xf32>
    %343 = arith.mulf %336, %342 : vector<2x64xf32>
    %cst_85 = arith.constant dense<0.000000e+00> : vector<2x128xf32>
    %344 = tpu.matmul %343, %3, %cst_85 {dimension_numbers = #tpu.dot_dimension_numbers<[1], [0], [0], [1], [0, 0, 1, 1], [], []>} : vector<2x64xf32>, vector<64x128xf32>, vector<2x128xf32> -> vector<2x128xf32>
    %345 = vector.broadcast %4 : vector<1x128xf32> to vector<2x128xf32>
    %346 = arith.addf %344, %345 : vector<2x128xf32>
    %cst_86 = arith.constant -3.000000e+38 : f32
    %347 = vector.broadcast %cst_86 : f32 to vector<2x128xf32>
    %348 = arith.select %7, %346, %347 : vector<2x128xi1>, vector<2x128xf32>
    %cst_87 = arith.constant dense<0xFF800000> : vector<2xf32>
    %349 = vector.multi_reduction <maximumf>, %348, %cst_87 [1] : vector<2x128xf32> to vector<2xf32>
    %350 = vector.shape_cast %349 : vector<2xf32> to vector<2x1xf32>
    %351 = vector.broadcast %350 : vector<2x1xf32> to vector<2x128xf32>
    %352 = arith.cmpf oeq, %346, %351 : vector<2x128xf32>
    %353 = arith.andi %7, %352 : vector<2x128xi1>
    %c128_i32_88 = arith.constant 128 : i32
    %354 = vector.broadcast %c128_i32_88 : i32 to vector<2x128xi32>
    %355 = arith.select %353, %5, %354 : vector<2x128xi1>, vector<2x128xi32>
    %cst_89 = arith.constant dense<2147483647> : vector<2xi32>
    %356 = vector.multi_reduction <minsi>, %355, %cst_89 [1] : vector<2x128xi32> to vector<2xi32>
    %357 = vector.shape_cast %356 : vector<2xi32> to vector<2x1xi32>
    %c5_i32_90 = arith.constant 5 : i32
    %358 = vector.broadcast %c5_i32_90 : i32 to vector<2x1xi32>
    %359 = arith.cmpi eq, %357, %358 : vector<2x1xi32>
    %360 = arith.ori %300, %359 : vector<2x1xi1>
    %c3_i32_91 = arith.constant 3 : i32
    %361 = vector.broadcast %c3_i32_91 : i32 to vector<2x128xi32>
    %362 = arith.cmpi eq, %5, %361 : vector<2x128xi32>
    %cst_92 = arith.constant 0.000000e+00 : f32
    %363 = vector.broadcast %cst_92 : f32 to vector<2x128xf32>
    %364 = arith.select %362, %346, %363 : vector<2x128xi1>, vector<2x128xf32>
    %365 = vector.shape_cast %360 : vector<2x1xi1> to vector<2x1xi1>
    %366 = vector.broadcast %365 : vector<2x1xi1> to vector<2x128xi1>
    %367 = arith.select %366, %364, %346 : vector<2x128xi1>, vector<2x128xf32>
    %c5 = arith.constant 5 : index
    %c0_93 = arith.constant 0 : index
    %c0_94 = arith.constant 0 : index
    %368 = vector.load %arg8[%c5, %c0_93, %c0_94] : memref<6x2x128xf32, #tpu.memory_space<vmem>>, vector<1x2x128xf32>
    %369 = vector.shape_cast %368 : vector<1x2x128xf32> to vector<2x128xf32>
    %370 = vector.shape_cast %367 : vector<2x128xf32> to vector<1x2x128xf32>
    tpu.vector_store %arg8[%c5, %c0_93, %c0_94], %370 {strides = array<i32>} : memref<6x2x128xf32, #tpu.memory_space<vmem>>, vector<1x2x128xf32>,
    return
  }
  func.func @transform_0(%arg0: i32) -> (i32, i32) {
    %c0_i32 = arith.constant 0 : i32
    %c0_i32_0 = arith.constant 0 : i32
    %c0_i32_1 = arith.constant 0 : i32
    return %c0_i32, %c0_i32_0 : i32, i32
  }
  func.func @transform_1(%arg0: i32) -> (i32, i32) {
    %c0_i32 = arith.constant 0 : i32
    %c0_i32_0 = arith.constant 0 : i32
    %c0_i32_1 = arith.constant 0 : i32
    return %c0_i32, %c0_i32_0 : i32, i32
  }
  func.func @transform_2(%arg0: i32) -> (i32, i32) {
    %c0_i32 = arith.constant 0 : i32
    %c0_i32_0 = arith.constant 0 : i32
    %c0_i32_1 = arith.constant 0 : i32
    return %c0_i32, %c0_i32_0 : i32, i32
  }
  func.func @transform_3(%arg0: i32) -> (i32, i32) {
    %c0_i32 = arith.constant 0 : i32
    %c0_i32_0 = arith.constant 0 : i32
    %c0_i32_1 = arith.constant 0 : i32
    return %c0_i32, %c0_i32_0 : i32, i32
  }
  func.func @transform_4(%arg0: i32) -> (i32, i32) {
    %c0_i32 = arith.constant 0 : i32
    %c0_i32_0 = arith.constant 0 : i32
    %c0_i32_1 = arith.constant 0 : i32
    return %c0_i32, %c0_i32_0 : i32, i32
  }
  func.func @transform_5(%arg0: i32) -> (i32, i32) {
    %c0_i32 = arith.constant 0 : i32
    %c0_i32_0 = arith.constant 0 : i32
    %c0_i32_1 = arith.constant 0 : i32
    return %c0_i32, %c0_i32_0 : i32, i32
  }
  func.func @transform_6(%arg0: i32) -> (i32, i32) {
    %c0_i32 = arith.constant 0 : i32
    %c0_i32_0 = arith.constant 0 : i32
    %c0_i32_1 = arith.constant 0 : i32
    return %c0_i32, %c0_i32_0 : i32, i32
  }
  func.func @transform_7(%arg0: i32) -> (i32, i32, i32) {
    %c0_i32 = arith.constant 0 : i32
    %c0_i32_0 = arith.constant 0 : i32
    %c0_i32_1 = arith.constant 0 : i32
    %c0_i32_2 = arith.constant 0 : i32
    return %c0_i32, %c0_i32_0, %c0_i32_1 : i32, i32, i32
  }
}

</mosaic_0001>

<llo_original>
// kernel: tpu_custom_call.1
$region0: #{tpu_custom_call.1}
  #allocation0 [shape = 'u32[]', space=smem, size = 0x4, offset = 0x4, fixed_abs, tag = 'smem constant byte address 0x4 - core index']
  #allocation1 [shape = 'u32[144,128]{1,0:T(1,128)}', space=vmem, size = 0x12000, scoped, tag = 'internal scratch']
  %s0 = inlined_call_operand.hbm [shape: f32[2,64], index: 0, kind: input, shape index: {}]
  %s1 = inlined_call_operand.hbm [shape: f32[2,64], index: 1, kind: input, shape index: {}]
  %s2 = inlined_call_operand.vmem [shape: f32[1,256], index: 2, kind: input, shape index: {}]
  %s3 = inlined_call_operand.hbm [shape: f32[64,256], index: 3, kind: input, shape index: {}]
  %s4 = inlined_call_operand.vmem [shape: f32[1,256], index: 4, kind: input, shape index: {}]
  %s5 = inlined_call_operand.hbm [shape: f32[64,128], index: 5, kind: input, shape index: {}]
  %s6 = inlined_call_operand.vmem [shape: f32[1,128], index: 6, kind: input, shape index: {}]
  %s7 = inlined_call_operand.hbm [shape: f32[6,2,128], index: 7, kind: output, shape index: {}]
  %s8 = sld [smem:[#allocation0]]
  $region54: #{tpu_custom_call.1} parent=0
    _
  %s10 = ssub.s32 1, %s8
  %s11 = scalar_select 0, %s10, %s8
  $region1: #{tpu_custom_call.1} parent=0
    #allocation2 [shape = 'u8[1024]{0}', space=vmem, size = 0x400, scoped, tag = 'input window, operand 0, single buffered']
    #allocation3 [shape = 's32[1]{0}', space=sflag, size = 0x4, scoped, tag = 'scoped memory for tpu_custom_call.1']
    #allocation4 [shape = 's32[1]{0}', space=sflag, size = 0x4, scoped, tag = 'scoped memory for tpu_custom_call.1']
    #allocation5 [shape = 'u8[1024]{0}', space=vmem, size = 0x400, scoped, tag = 'input window, operand 1, single buffered']
    #allocation6 [shape = 's32[1]{0}', space=sflag, size = 0x4, scoped, tag = 'scoped memory for tpu_custom_call.1']
    #allocation7 [shape = 'u8[65536]{0}', space=vmem, size = 0x10000, scoped, tag = 'input window, operand 3, single buffered']
    #allocation8 [shape = 'u8[32768]{0}', space=vmem, size = 0x8000, scoped, tag = 'input window, operand 5, single buffered']
    #allocation9 [shape = 's32[1]{0}', space=sflag, size = 0x4, scoped, tag = 'scoped memory for tpu_custom_call.1']
    #allocation10 [shape = 'u8[6144]{0}', space=vmem, size = 0x1800, scoped, tag = 'output window, operand 0, single buffered']
    %12 = vsyncpa [#allocation3], 0
    %13 = vsyncpa [#allocation6], 0
    %14 = vsyncpa [#allocation9], 0
    %15 = vsyncpa [#allocation4], 0
    // Predicated region
    $region2: #{tpu_custom_call.1} parent=1 // pred_check
      _
    $region3: #{tpu_custom_call.1} parent=1 // pred_check_branch
      %17 = sbr.rel (0) target = $region5
    $region4: #{tpu_custom_call.1} parent=1 // pred_region
      %s19 = ssub.s32 32, 32
      %20 = vsyncadd [#allocation3], %s19
      %s22 = sshll.u32 [#allocation2], 4
      %s23 = int_to_ptr.vmem [resolvable:$true] %s22
      %25 = dma.hbm_to_vmem [thread:$0]  %s0, 32, %s23, [#allocation3]
    $region5: #{tpu_custom_call.1} parent=1 // pred_fallthru
      _
    // Predicated region
    $region6: #{tpu_custom_call.1} parent=1 // pred_check
      _
    $region7: #{tpu_custom_call.1} parent=1 // pred_check_branch
      %27 = sbr.rel (0) target = $region9
    $region8: #{tpu_custom_call.1} parent=1 // pred_region
      %s29 = ssub.s32 32, 32
      %30 = vsyncadd [#allocation6], %s29
      %s32 = sshll.u32 [#allocation5], 4
      %s33 = int_to_ptr.vmem [resolvable:$true] %s32
      %35 = dma.hbm_to_vmem [thread:$0]  %s1, 32, %s33, [#allocation6]
    $region9: #{tpu_custom_call.1} parent=1 // pred_fallthru
      _
    // Predicated region
    $region10: #{tpu_custom_call.1} parent=1 // pred_check
      _
    $region11: #{tpu_custom_call.1} parent=1 // pred_check_branch
      %37 = sbr.rel (0) target = $region13
    $region12: #{tpu_custom_call.1} parent=1 // pred_region
      _
    $region13: #{tpu_custom_call.1} parent=1 // pred_fallthru
      _
    // Predicated region
    $region14: #{tpu_custom_call.1} parent=1 // pred_check
      _
    $region15: #{tpu_custom_call.1} parent=1 // pred_check_branch
      %39 = sbr.rel (0) target = $region17
    $region16: #{tpu_custom_call.1} parent=1 // pred_region
      %s41 = ssub.s32 2048, 2048
      %42 = vsyncadd [#allocation6], %s41
      %s43 = sshll.u32 [#allocation7], 4
      %s44 = int_to_ptr.vmem [resolvable:$true] %s43
      %49 = dma.hbm_to_vmem [thread:$0]  %s3, 2048, %s44, [#allocation6], 256, 256, 16
    $region17: #{tpu_custom_call.1} parent=1 // pred_fallthru
      _
    // Predicated region
    $region18: #{tpu_custom_call.1} parent=1 // pred_check
      _
    $region19: #{tpu_custom_call.1} parent=1 // pred_check_branch
      %51 = sbr.rel (0) target = $region21
    $region20: #{tpu_custom_call.1} parent=1 // pred_region
      _
    $region21: #{tpu_custom_call.1} parent=1 // pred_fallthru
      _
    // Predicated region
    $region22: #{tpu_custom_call.1} parent=1 // pred_check
      _
    $region23: #{tpu_custom_call.1} parent=1 // pred_check_branch
      %53 = sbr.rel (0) target = $region25
    $region24: #{tpu_custom_call.1} parent=1 // pred_region
      %s55 = ssub.s32 1024, 1024
      %56 = vsyncadd [#allocation9], %s55
      %s57 = sshll.u32 [#allocation8], 4
      %s58 = int_to_ptr.vmem [resolvable:$true] %s57
      %63 = dma.hbm_to_vmem [thread:$0]  %s5, 1024, %s58, [#allocation9], 128, 128, 8
    $region25: #{tpu_custom_call.1} parent=1 // pred_fallthru
      _
    // Predicated region
    $region26: #{tpu_custom_call.1} parent=1 // pred_check
      _
    $region27: #{tpu_custom_call.1} parent=1 // pred_check_branch
      %65 = sbr.rel (0) target = $region29
    $region28: #{tpu_custom_call.1} parent=1 // pred_region
      _
    $region29: #{tpu_custom_call.1} parent=1 // pred_fallthru
      _
    // Predicated region
    $region30: #{tpu_custom_call.1} parent=1 // pred_check
      _
    $region31: #{tpu_custom_call.1} parent=1 // pred_check_branch
      %67 = sbr.rel (0) target = $region33
    $region32: #{tpu_custom_call.1} parent=1 // pred_region
      %68 = dma.done [#allocation3], 32
    $region33: #{tpu_custom_call.1} parent=1 // pred_fallthru
      _
    // Predicated region
    $region34: #{tpu_custom_call.1} parent=1 // pred_check
      _
    $region35: #{tpu_custom_call.1} parent=1 // pred_check_branch
      %70 = sbr.rel (0) target = $region37
    $region36: #{tpu_custom_call.1} parent=1 // pred_region
      %71 = dma.done [#allocation6], 32
    $region37: #{tpu_custom_call.1} parent=1 // pred_fallthru
      _
    // Predicated region
    $region38: #{tpu_custom_call.1} parent=1 // pred_check
      _
    $region39: #{tpu_custom_call.1} parent=1 // pred_check_branch
      %73 = sbr.rel (0) target = $region41
    $region40: #{tpu_custom_call.1} parent=1 // pred_region
      %74 = dma.done [#allocation6], 2048
    $region41: #{tpu_custom_call.1} parent=1 // pred_fallthru
      _
    // Predicated region
    $region42: #{tpu_custom_call.1} parent=1 // pred_check
      _
    $region43: #{tpu_custom_call.1} parent=1 // pred_check_branch
      %76 = sbr.rel (0) target = $region45
    $region44: #{tpu_custom_call.1} parent=1 // pred_region
      %77 = dma.done [#allocation9], 1024
    $region45: #{tpu_custom_call.1} parent=1 // pred_fallthru
      _
    %v78 = vld [vmem:[%s2] sm:$0x3]
    %v79 = vld [vmem:[#allocation7] sm:$0xff]
    %v80 = vld [vmem:[#allocation7 + $0x8] sm:$0xff]
    %v81 = vld [vmem:[#allocation7 + $0x10] sm:$0xff]
    %v82 = vld [vmem:[#allocation7 + $0x18] sm:$0xff]
    %v83 = vld [vmem:[#allocation7 + $0x20] sm:$0xff]
    %v84 = vld [vmem:[#allocation7 + $0x28] sm:$0xff]
    %v85 = vld [vmem:[#allocation7 + $0x30] sm:$0xff]
    %v86 = vld [vmem:[#allocation7 + $0x38] sm:$0xff]
    %v87 = vld [vmem:[#allocation7 + $0x40] sm:$0xff]
    %v88 = vld [vmem:[#allocation7 + $0x48] sm:$0xff]
    %v89 = vld [vmem:[#allocation7 + $0x50] sm:$0xff]
    %v90 = vld [vmem:[#allocation7 + $0x58] sm:$0xff]
    %v91 = vld [vmem:[#allocation7 + $0x60] sm:$0xff]
    %v92 = vld [vmem:[#allocation7 + $0x68] sm:$0xff]
    %v93 = vld [vmem:[#allocation7 + $0x70] sm:$0xff]
    %v94 = vld [vmem:[#allocation7 + $0x78] sm:$0xff]
    %v95 = vld [vmem:[%s4] sm:$0x3]
    %v96 = vld [vmem:[#allocation8] sm:$0xff]
    %v97 = vld [vmem:[#allocation8 + $0x8] sm:$0xff]
    %v98 = vld [vmem:[#allocation8 + $0x10] sm:$0xff]
    %v99 = vld [vmem:[#allocation8 + $0x18] sm:$0xff]
    %v100 = vld [vmem:[#allocation8 + $0x20] sm:$0xff]
    %v101 = vld [vmem:[#allocation8 + $0x28] sm:$0xff]
    %v102 = vld [vmem:[#allocation8 + $0x30] sm:$0xff]
    %v103 = vld [vmem:[#allocation8 + $0x38] sm:$0xff]
    %v104 = vld [vmem:[%s6] sm:$0x1]
    %v105 = vlaneseq
    %v106 = vand.u32 %v105, 127
    %vm107 = vcmp.lt.s32.totalorder %v106, 8
    %v108 = vld [vmem:[#allocation2] sm:$0x3]
    %v109 = vld [vmem:[#allocation5] sm:$0x3]
    %v111 = vlaneseq
    %v112 = vshrl.u32 %v111, 7
    %v113 = vsub.s32 0, %v112
    %v114 = vrot.slane %v78, %v113
    %v115 = vlaneseq
    %v116 = vshrl.u32 %v115, 7
    %v117 = vsub.s32 1, %v116
    %v118 = vrot.slane %v78, %v117
    %v121 = vmul.f32 %v114, 7.0
    %v122 = vmul.f32 %v118, 7.0
    %vm123 = vcmask 523264
    %v125 = vsel %vm123, %v108, 0
    %127 = vmatprep.subr.mxu0 0.0
    %128 = vmatpush1.msra.mxu0 0.0
    %129 = vmatprep.subr.mxu0 0.0
    %130 = vmatpush1.msra.mxu0 0.0
    %131 = vmatprep.subr.mxu0 0.0
    %132 = vmatpush1.msra.mxu0 0.0
    %133 = vmatprep.subr.mxu0 0.0
    %134 = vmatpush1.msra.mxu0 0.0
    %135 = vmatprep.subr.mxu0 0.0
    %136 = vmatpush1.msra.mxu0 0.0
    %137 = vmatprep.subr.mxu0 0.0
    %138 = vmatpush1.msra.mxu0 0.0
    %139 = vmatprep.subr.mxu0 0.0
    %140 = vmatpush1.msra.mxu0 0.0
    %141 = vmatprep.subr.mxu0 0.0
    %142 = vmatpush1.msra.mxu0 0.0
    %143 = vmatprep.subr.mxu0 %v94
    %144 = vmatpush1.msra.mxu0 %v93
    %145 = vmatprep.subr.mxu0 %v92
    %146 = vmatpush1.msra.mxu0 %v91
    %147 = vmatprep.subr.mxu0 %v90
    %148 = vmatpush1.msra.mxu0 %v89
    %149 = vmatprep.subr.mxu0 %v88
    %150 = vmatpush1.msra.mxu0 %v87
    %151 = vmatprep.subr.mxu0 %v86
    %152 = vmatpush1.msra.mxu0 %v85
    %153 = vmatprep.subr.mxu0 %v84
    %154 = vmatpush1.msra.mxu0 %v83
    %155 = vmatprep.subr.mxu0 %v82
    %156 = vmatpush1.msra.mxu0 %v81
    %157 = vmatprep.subr.mxu0 %v80
    %158 = vmatpush1.msra.mxu0 %v79
    %159 = vmatprep.subr.mxu0 0.0
    %160 = vmatpush2.msra.mxu0 0.0
    %161 = vmatprep.subr.mxu0 0.0
    %162 = vmatpush2.msra.mxu0 0.0
    %163 = vmatprep.subr.mxu0 0.0
    %164 = vmatpush2.msra.mxu0 0.0
    %165 = vmatprep.subr.mxu0 0.0
    %166 = vmatpush2.msra.mxu0 0.0
    %167 = vmatprep.subr.mxu0 0.0
    %168 = vmatpush2.msra.mxu0 0.0
    %169 = vmatprep.subr.mxu0 0.0
    %170 = vmatpush2.msra.mxu0 0.0
    %171 = vmatprep.subr.mxu0 0.0
    %172 = vmatpush2.msra.mxu0 0.0
    %173 = vmatprep.subr.mxu0 0.0
    %174 = vmatpush2.msra.mxu0 0.0
    %175 = vmatprep.subr.mxu0 0.0
    %176 = vmatpush2.msra.mxu0 0.0
    %177 = vmatprep.subr.mxu0 0.0
    %178 = vmatpush2.msra.mxu0 0.0
    %179 = vmatprep.subr.mxu0 0.0
    %180 = vmatpush2.msra.mxu0 0.0
    %181 = vmatprep.subr.mxu0 0.0
    %182 = vmatpush2.msra.mxu0 0.0
    %183 = vmatprep.subr.mxu0 0.0
    %184 = vmatpush2.msra.mxu0 0.0
    %185 = vmatprep.subr.mxu0 0.0
    %186 = vmatpush2.msra.mxu0 0.0
    %187 = vmatprep.subr.mxu0 0.0
    %188 = vmatpush2.msra.mxu0 0.0
    %189 = vmatprep.subr.mxu0 0.0
    %190 = vmatpush2.msra.mxu0 0.0
    %191 = vmatprep.mubr.f32.mxu0 0.0
    %192 = vmatmul.mubr.f32.gmra.mxu0 %v125
    %v193 = vpop.f32.mrf.mxu0
    %v194 = vadd.f32 0.0, %v193
    %v195 = vpop.f32.mrf.mxu0
    %v196 = vadd.f32 0.0, %v195
    %197 = vdwg.mxu0
    %v198 = vadd.f32 %v121, %v194
    %v199 = vadd.f32 %v122, %v196
    %v201 = vlaneseq
    %v202 = vshrl.u32 %v201, 7
    %v203 = vsub.s32 0, %v202
    %v204 = vrot.slane %v95, %v203
    %v205 = vlaneseq
    %v206 = vshrl.u32 %v205, 7
    %v207 = vsub.s32 1, %v206
    %v208 = vrot.slane %v95, %v207
    %v211 = vadd.f32 %v198, %v204
    %v212 = vadd.f32 %v199, %v208
    %v213 = vxor.u32 %v211, 2147483648
    %v214 = vmul.f32 %v213, 1.442695
    %v215 = vpow.pop %v214
    %v216 = vadd.f32 %v215, 1.0
    %v217 = vrcp.pop %v216
    %v218 = vmul.f32 1.0, %v217
    %v219 = vxor.u32 %v212, 2147483648
    %v220 = vmul.f32 %v219, 1.442695
    %v221 = vpow.pop %v220
    %v222 = vadd.f32 %v221, 1.0
    %v223 = vrcp.pop %v222
    %v224 = vmul.f32 1.0, %v223
    %v225 = vtanh.pop %v212
    %227 = vrot.lane.b32.xlu0 %v109, 64
    %v228 = vpop.permute.xlu0 %227
    %v230 = vmul.f32 %v218, %v228
    %232 = vrot.lane.b32.xlu0 %v225, 64
    %v233 = vpop.permute.xlu0 %232
    %v235 = vmul.f32 %v218, %v233
    %237 = vrot.lane.b32.xlu0 %v235, 64
    %v238 = vpop.permute.xlu0 %237
    %v240 = vadd.f32 %v230, %v238
    %v241 = vtanh.pop %v240
    %243 = vrot.lane.b32.xlu0 %v241, 64
    %v244 = vpop.permute.xlu0 %243
    %v246 = vmul.f32 %v224, %v244
    %v248 = vlaneseq
    %v249 = vshrl.u32 %v248, 7
    %v250 = vsub.s32 0, %v249
    %v251 = vrot.slane %v104, %v250
    %v254 = vsel %vm123, %v246, 0
    %256 = vmatprep.subr.mxu0 0.0
    %257 = vmatpush1.msra.mxu0 0.0
    %258 = vmatprep.subr.mxu0 0.0
    %259 = vmatpush1.msra.mxu0 0.0
    %260 = vmatprep.subr.mxu0 0.0
    %261 = vmatpush1.msra.mxu0 0.0
    %262 = vmatprep.subr.mxu0 0.0
    %263 = vmatpush1.msra.mxu0 0.0
    %264 = vmatprep.subr.mxu0 0.0
    %265 = vmatpush1.msra.mxu0 0.0
    %266 = vmatprep.subr.mxu0 0.0
    %267 = vmatpush1.msra.mxu0 0.0
    %268 = vmatprep.subr.mxu0 0.0
    %269 = vmatpush1.msra.mxu0 0.0
    %270 = vmatprep.subr.mxu0 0.0
    %271 = vmatpush1.msra.mxu0 0.0
    %272 = vmatprep.subr.mxu0 0.0
    %273 = vmatpush1.msra.mxu0 %v103
    %274 = vmatprep.subr.mxu0 0.0
    %275 = vmatpush1.msra.mxu0 %v102
    %276 = vmatprep.subr.mxu0 0.0
    %277 = vmatpush1.msra.mxu0 %v101
    %278 = vmatprep.subr.mxu0 0.0
    %279 = vmatpush1.msra.mxu0 %v100
    %280 = vmatprep.subr.mxu0 0.0
    %281 = vmatpush1.msra.mxu0 %v99
    %282 = vmatprep.subr.mxu0 0.0
    %283 = vmatpush1.msra.mxu0 %v98
    %284 = vmatprep.subr.mxu0 0.0
    %285 = vmatpush1.msra.mxu0 %v97
    %286 = vmatprep.subr.mxu0 0.0
    %287 = vmatpush1.msra.mxu0 %v96
    %288 = vmatprep.subr.mxu0 0.0
    %289 = vmatpush2.msra.mxu0 0.0
    %290 = vmatprep.subr.mxu0 0.0
    %291 = vmatpush2.msra.mxu0 0.0
    %292 = vmatprep.subr.mxu0 0.0
    %293 = vmatpush2.msra.mxu0 0.0
    %294 = vmatprep.subr.mxu0 0.0
    %295 = vmatpush2.msra.mxu0 0.0
    %296 = vmatprep.subr.mxu0 0.0
    %297 = vmatpush2.msra.mxu0 0.0
    %298 = vmatprep.subr.mxu0 0.0
    %299 = vmatpush2.msra.mxu0 0.0
    %300 = vmatprep.subr.mxu0 0.0
    %301 = vmatpush2.msra.mxu0 0.0
    %302 = vmatprep.subr.mxu0 0.0
    %303 = vmatpush2.msra.mxu0 0.0
    %304 = vmatprep.subr.mxu0 0.0
    %305 = vmatpush2.msra.mxu0 0.0
    %306 = vmatprep.subr.mxu0 0.0
    %307 = vmatpush2.msra.mxu0 0.0
    %308 = vmatprep.subr.mxu0 0.0
    %309 = vmatpush2.msra.mxu0 0.0
    %310 = vmatprep.subr.mxu0 0.0
    %311 = vmatpush2.msra.mxu0 0.0
    %312 = vmatprep.subr.mxu0 0.0
    %313 = vmatpush2.msra.mxu0 0.0
    %314 = vmatprep.subr.mxu0 0.0
    %315 = vmatpush2.msra.mxu0 0.0
    %316 = vmatprep.subr.mxu0 0.0
    %317 = vmatpush2.msra.mxu0 0.0
    %318 = vmatprep.subr.mxu0 0.0
    %319 = vmatpush2.msra.mxu0 0.0
    %320 = vmatprep.mubr.f32.mxu0 0.0
    %321 = vmatmul.mubr.f32.gmra.mxu0 %v254
    %v322 = vpop.f32.mrf.mxu0
    %v323 = vadd.f32 %v251, %v322
    %v324 = vpop.f32.mrf.mxu0
    %325 = vdwg.mxu0
    %v326 = vsel %vm107, %v323, -3e+38
    %vm327 = vcmask 1041408
    %v328 = vsel %vm327, %v326, -inf
    %329 = vmax.xlane.f32.xlu0 %v328
    %v330 = vpop.xlane.xlu0 %329
    %vm331 = vcmp.eq.f32.partialorder %v323, %v330
    %vm332 = vmand %vm107, %vm331
    %v333 = vsel %vm332, %v106, 128
    %v334 = vsel %vm327, %v333, 2147483647
    %v335 = vand.u32 %v334, 65535
    %v336 = vshra.s32 %v334, 16
    %v337 = vcvt.s32.f32 %v335
    %v338 = vcvt.s32.f32 %v336
    %339 = vmin.xlane.f32.xlu0 %v338
    %v340 = vpop.xlane.xlu0 %339
    %vm341 = vcmp.eq.f32.partialorder %v338, %v340
    %v342 = vsel %vm341, %v337, inf
    %343 = vmin.xlane.f32.xlu0 %v342
    %v344 = vpop.xlane.xlu0 %343
    %v345 = vcvt.f32.s32 %v344
    %v346 = vcvt.f32.s32 %v340
    %v347 = vshll.u32 %v346, 16
    %v348 = vadd.s32 %v347, %v345
    %vm349 = vcmp.eq.s32.totalorder %v348, 5
    %vm350 = vcmp.eq.s32.totalorder %v106, 3
    %v351 = vsel %vm350, %v323, 0.0
    %v352 = vsel %vm349, 1, 0
    %vm353 = vcmp.eq.s32.totalorder %v352, 1
    %v354 = vsel %vm353, %v351, %v323
    %355 = vst [vmem:[#allocation10] sm:$0x3] %v354
    %v356 = vcvt.s32.f32 %v348
    %v357 = vmul.f32 %v356, %v114
    %v358 = vmul.f32 %v356, %v118
    %359 = vmatprep.subr.mxu0 0.0
    %360 = vmatpush1.msra.mxu0 0.0
    %361 = vmatprep.subr.mxu0 0.0
    %362 = vmatpush1.msra.mxu0 0.0
    %363 = vmatprep.subr.mxu0 0.0
    %364 = vmatpush1.msra.mxu0 0.0
    %365 = vmatprep.subr.mxu0 0.0
    %366 = vmatpush1.msra.mxu0 0.0
    %367 = vmatprep.subr.mxu0 0.0
    %368 = vmatpush1.msra.mxu0 0.0
    %369 = vmatprep.subr.mxu0 0.0
    %370 = vmatpush1.msra.mxu0 0.0
    %371 = vmatprep.subr.mxu0 0.0
    %372 = vmatpush1.msra.mxu0 0.0
    %373 = vmatprep.subr.mxu0 0.0
    %374 = vmatpush1.msra.mxu0 0.0
    %375 = vmatprep.subr.mxu0 %v94
    %376 = vmatpush1.msra.mxu0 %v93
    %377 = vmatprep.subr.mxu0 %v92
    %378 = vmatpush1.msra.mxu0 %v91
    %379 = vmatprep.subr.mxu0 %v90
    %380 = vmatpush1.msra.mxu0 %v89
    %381 = vmatprep.subr.mxu0 %v88
    %382 = vmatpush1.msra.mxu0 %v87
    %383 = vmatprep.subr.mxu0 %v86
    %384 = vmatpush1.msra.mxu0 %v85
    %385 = vmatprep.subr.mxu0 %v84
    %386 = vmatpush1.msra.mxu0 %v83
    %387 = vmatprep.subr.mxu0 %v82
    %388 = vmatpush1.msra.mxu0 %v81
    %389 = vmatprep.subr.mxu0 %v80
    %390 = vmatpush1.msra.mxu0 %v79
    %391 = vmatprep.subr.mxu0 0.0
    %392 = vmatpush2.msra.mxu0 0.0
    %393 = vmatprep.subr.mxu0 0.0
    %394 = vmatpush2.msra.mxu0 0.0
    %395 = vmatprep.subr.mxu0 0.0
    %396 = vmatpush2.msra.mxu0 0.0
    %397 = vmatprep.subr.mxu0 0.0
    %398 = vmatpush2.msra.mxu0 0.0
    %399 = vmatprep.subr.mxu0 0.0
    %400 = vmatpush2.msra.mxu0 0.0
    %401 = vmatprep.subr.mxu0 0.0
    %402 = vmatpush2.msra.mxu0 0.0
    %403 = vmatprep.subr.mxu0 0.0
    %404 = vmatpush2.msra.mxu0 0.0
    %405 = vmatprep.subr.mxu0 0.0
    %406 = vmatpush2.msra.mxu0 0.0
    %407 = vmatprep.subr.mxu0 0.0
    %408 = vmatpush2.msra.mxu0 0.0
    %409 = vmatprep.subr.mxu0 0.0
    %410 = vmatpush2.msra.mxu0 0.0
    %411 = vmatprep.subr.mxu0 0.0
    %412 = vmatpush2.msra.mxu0 0.0
    %413 = vmatprep.subr.mxu0 0.0
    %414 = vmatpush2.msra.mxu0 0.0
    %415 = vmatprep.subr.mxu0 0.0
    %416 = vmatpush2.msra.mxu0 0.0
    %417 = vmatprep.subr.mxu0 0.0
    %418 = vmatpush2.msra.mxu0 0.0
    %419 = vmatprep.subr.mxu0 0.0
    %420 = vmatpush2.msra.mxu0 0.0
    %421 = vmatprep.subr.mxu0 0.0
    %422 = vmatpush2.msra.mxu0 0.0
    %423 = vmatprep.mubr.f32.mxu0 0.0
    %424 = vmatmul.mubr.f32.gmra.mxu0 %v254
    %v425 = vpop.f32.mrf.mxu0
    %v426 = vadd.f32 0.0, %v425
    %v427 = vpop.f32.mrf.mxu0
    %v428 = vadd.f32 0.0, %v427
    %429 = vdwg.mxu0
    %v430 = vadd.f32 %v357, %v426
    %v431 = vadd.f32 %v358, %v428
    %v432 = vadd.f32 %v430, %v204
    %v433 = vadd.f32 %v431, %v208
    %v434 = vxor.u32 %v432, 2147483648
    %v435 = vmul.f32 %v434, 1.442695
    %v436 = vpow.pop %v435
    %v437 = vadd.f32 %v436, 1.0
    %v438 = vrcp.pop %v437
    %v439 = vmul.f32 1.0, %v438
    %v440 = vxor.u32 %v433, 2147483648
    %v441 = vmul.f32 %v440, 1.442695
    %v442 = vpow.pop %v441
    %v443 = vadd.f32 %v442, 1.0
    %v444 = vrcp.pop %v443
    %v445 = vmul.f32 1.0, %v444
    %v446 = vtanh.pop %v433
    %v447 = vmul.f32 %v439, %v240
    %449 = vrot.lane.b32.xlu0 %v446, 64
    %v450 = vpop.permute.xlu0 %449
    %v452 = vmul.f32 %v439, %v450
    %454 = vrot.lane.b32.xlu0 %v452, 64
    %v455 = vpop.permute.xlu0 %454
    %v457 = vadd.f32 %v447, %v455
    %v458 = vtanh.pop %v457
    %460 = vrot.lane.b32.xlu0 %v458, 64
    %v461 = vpop.permute.xlu0 %460
    %v463 = vmul.f32 %v445, %v461
    %v465 = vsel %vm123, %v463, 0
    %467 = vmatprep.subr.mxu0 0.0
    %468 = vmatpush1.msra.mxu0 0.0
    %469 = vmatprep.subr.mxu0 0.0
    %470 = vmatpush1.msra.mxu0 0.0
    %471 = vmatprep.subr.mxu0 0.0
    %472 = vmatpush1.msra.mxu0 0.0
    %473 = vmatprep.subr.mxu0 0.0
    %474 = vmatpush1.msra.mxu0 0.0
    %475 = vmatprep.subr.mxu0 0.0
    %476 = vmatpush1.msra.mxu0 0.0
    %477 = vmatprep.subr.mxu0 0.0
    %478 = vmatpush1.msra.mxu0 0.0
    %479 = vmatprep.subr.mxu0 0.0
    %480 = vmatpush1.msra.mxu0 0.0
    %481 = vmatprep.subr.mxu0 0.0
    %482 = vmatpush1.msra.mxu0 0.0
    %483 = vmatprep.subr.mxu0 0.0
    %484 = vmatpush1.msra.mxu0 %v103
    %485 = vmatprep.subr.mxu0 0.0
    %486 = vmatpush1.msra.mxu0 %v102
    %487 = vmatprep.subr.mxu0 0.0
    %488 = vmatpush1.msra.mxu0 %v101
    %489 = vmatprep.subr.mxu0 0.0
    %490 = vmatpush1.msra.mxu0 %v100
    %491 = vmatprep.subr.mxu0 0.0
    %492 = vmatpush1.msra.mxu0 %v99
    %493 = vmatprep.subr.mxu0 0.0
    %494 = vmatpush1.msra.mxu0 %v98
    %495 = vmatprep.subr.mxu0 0.0
    %496 = vmatpush1.msra.mxu0 %v97
    %497 = vmatprep.subr.mxu0 0.0
    %498 = vmatpush1.msra.mxu0 %v96
    %499 = vmatprep.subr.mxu0 0.0
    %500 = vmatpush2.msra.mxu0 0.0
    %501 = vmatprep.subr.mxu0 0.0
    %502 = vmatpush2.msra.mxu0 0.0
    %503 = vmatprep.subr.mxu0 0.0
    %504 = vmatpush2.msra.mxu0 0.0
    %505 = vmatprep.subr.mxu0 0.0
    %506 = vmatpush2.msra.mxu0 0.0
    %507 = vmatprep.subr.mxu0 0.0
    %508 = vmatpush2.msra.mxu0 0.0
    %509 = vmatprep.subr.mxu0 0.0
    %510 = vmatpush2.msra.mxu0 0.0
    %511 = vmatprep.subr.mxu0 0.0
    %512 = vmatpush2.msra.mxu0 0.0
    %513 = vmatprep.subr.mxu0 0.0
    %514 = vmatpush2.msra.mxu0 0.0
    %515 = vmatprep.subr.mxu0 0.0
    %516 = vmatpush2.msra.mxu0 0.0
    %517 = vmatprep.subr.mxu0 0.0
    %518 = vmatpush2.msra.mxu0 0.0
    %519 = vmatprep.subr.mxu0 0.0
    %520 = vmatpush2.msra.mxu0 0.0
    %521 = vmatprep.subr.mxu0 0.0
    %522 = vmatpush2.msra.mxu0 0.0
    %523 = vmatprep.subr.mxu0 0.0
    %524 = vmatpush2.msra.mxu0 0.0
    %525 = vmatprep.subr.mxu0 0.0
    %526 = vmatpush2.msra.mxu0 0.0
    %527 = vmatprep.subr.mxu0 0.0
    %528 = vmatpush2.msra.mxu0 0.0
    %529 = vmatprep.subr.mxu0 0.0
    %530 = vmatpush2.msra.mxu0 0.0
    %531 = vmatprep.mubr.f32.mxu0 0.0
    %532 = vmatmul.mubr.f32.gmra.mxu0 %v465
    %v533 = vpop.f32.mrf.mxu0
    %v534 = vadd.f32 %v251, %v533
    %v535 = vpop.f32.mrf.mxu0
    %536 = vdwg.mxu0
    %v537 = vsel %vm107, %v534, -3e+38
    %v538 = vsel %vm327, %v537, -inf
    %539 = vmax.xlane.f32.xlu0 %v538
    %v540 = vpop.xlane.xlu0 %539
    %vm541 = vcmp.eq.f32.partialorder %v534, %v540
    %vm542 = vmand %vm107, %vm541
    %v543 = vsel %vm542, %v106, 128
    %v544 = vsel %vm327, %v543, 2147483647
    %v545 = vand.u32 %v544, 65535
    %v546 = vshra.s32 %v544, 16
    %v547 = vcvt.s32.f32 %v545
    %v548 = vcvt.s32.f32 %v546
    %549 = vmin.xlane.f32.xlu0 %v548
    %v550 = vpop.xlane.xlu0 %549
    %vm551 = vcmp.eq.f32.partialorder %v548, %v550
    %v552 = vsel %vm551, %v547, inf
    %553 = vmin.xlane.f32.xlu0 %v552
    %v554 = vpop.xlane.xlu0 %553
    %v555 = vcvt.f32.s32 %v554
    %v556 = vcvt.f32.s32 %v550
    %v557 = vshll.u32 %v556, 16
    %v558 = vadd.s32 %v557, %v555
    %vm559 = vcmp.eq.s32.totalorder %v558, 5
    %vm560 = vmor %vm349, %vm559
    %v561 = vsel %vm350, %v534, 0.0
    %v562 = vsel %vm560, 1, 0
    %vm563 = vcmp.eq.s32.totalorder %v562, 1
    %v564 = vsel %vm563, %v561, %v534
    %s565 = scalar_lea.vmem [#allocation10], 2
    %566 = vst [vmem:[%s565] sm:$0x3] %v564
    %v567 = vcvt.s32.f32 %v558
    %v568 = vmul.f32 %v567, %v114
    %v569 = vmul.f32 %v567, %v118
    %570 = vmatprep.subr.mxu0 0.0
    %571 = vmatpush1.msra.mxu0 0.0
    %572 = vmatprep.subr.mxu0 0.0
    %573 = vmatpush1.msra.mxu0 0.0
    %574 = vmatprep.subr.mxu0 0.0
    %575 = vmatpush1.msra.mxu0 0.0
    %576 = vmatprep.subr.mxu0 0.0
    %577 = vmatpush1.msra.mxu0 0.0
    %578 = vmatprep.subr.mxu0 0.0
    %579 = vmatpush1.msra.mxu0 0.0
    %580 = vmatprep.subr.mxu0 0.0
    %581 = vmatpush1.msra.mxu0 0.0
    %582 = vmatprep.subr.mxu0 0.0
    %583 = vmatpush1.msra.mxu0 0.0
    %584 = vmatprep.subr.mxu0 0.0
    %585 = vmatpush1.msra.mxu0 0.0
    %586 = vmatprep.subr.mxu0 %v94
    %587 = vmatpush1.msra.mxu0 %v93
    %588 = vmatprep.subr.mxu0 %v92
    %589 = vmatpush1.msra.mxu0 %v91
    %590 = vmatprep.subr.mxu0 %v90
    %591 = vmatpush1.msra.mxu0 %v89
    %592 = vmatprep.subr.mxu0 %v88
    %593 = vmatpush1.msra.mxu0 %v87
    %594 = vmatprep.subr.mxu0 %v86
    %595 = vmatpush1.msra.mxu0 %v85
    %596 = vmatprep.subr.mxu0 %v84
    %597 = vmatpush1.msra.mxu0 %v83
    %598 = vmatprep.subr.mxu0 %v82
    %599 = vmatpush1.msra.mxu0 %v81
    %600 = vmatprep.subr.mxu0 %v80
    %601 = vmatpush1.msra.mxu0 %v79
    %602 = vmatprep.subr.mxu0 0.0
    %603 = vmatpush2.msra.mxu0 0.0
    %604 = vmatprep.subr.mxu0 0.0
    %605 = vmatpush2.msra.mxu0 0.0
    %606 = vmatprep.subr.mxu0 0.0
    %607 = vmatpush2.msra.mxu0 0.0
    %608 = vmatprep.subr.mxu0 0.0
    %609 = vmatpush2.msra.mxu0 0.0
    %610 = vmatprep.subr.mxu0 0.0
    %611 = vmatpush2.msra.mxu0 0.0
    %612 = vmatprep.subr.mxu0 0.0
    %613 = vmatpush2.msra.mxu0 0.0
    %614 = vmatprep.subr.mxu0 0.0
    %615 = vmatpush2.msra.mxu0 0.0
    %616 = vmatprep.subr.mxu0 0.0
    %617 = vmatpush2.msra.mxu0 0.0
    %618 = vmatprep.subr.mxu0 0.0
    %619 = vmatpush2.msra.mxu0 0.0
    %620 = vmatprep.subr.mxu0 0.0
    %621 = vmatpush2.msra.mxu0 0.0
    %622 = vmatprep.subr.mxu0 0.0
    %623 = vmatpush2.msra.mxu0 0.0
    %624 = vmatprep.subr.mxu0 0.0
    %625 = vmatpush2.msra.mxu0 0.0
    %626 = vmatprep.subr.mxu0 0.0
    %627 = vmatpush2.msra.mxu0 0.0
    %628 = vmatprep.subr.mxu0 0.0
    %629 = vmatpush2.msra.mxu0 0.0
    %630 = vmatprep.subr.mxu0 0.0
    %631 = vmatpush2.msra.mxu0 0.0
    %632 = vmatprep.subr.mxu0 0.0
    %633 = vmatpush2.msra.mxu0 0.0
    %634 = vmatprep.mubr.f32.mxu0 0.0
    %635 = vmatmul.mubr.f32.gmra.mxu0 %v465
    %v636 = vpop.f32.mrf.mxu0
    %v637 = vadd.f32 0.0, %v636
    %v638 = vpop.f32.mrf.mxu0
    %v639 = vadd.f32 0.0, %v638
    %640 = vdwg.mxu0
    %v641 = vadd.f32 %v568, %v637
    %v642 = vadd.f32 %v569, %v639
    %v643 = vadd.f32 %v641, %v204
    %v644 = vadd.f32 %v642, %v208
    %v645 = vxor.u32 %v643, 2147483648
    %v646 = vmul.f32 %v645, 1.442695
    %v647 = vpow.pop %v646
    %v648 = vadd.f32 %v647, 1.0
    %v649 = vrcp.pop %v648
    %v650 = vmul.f32 1.0, %v649
    %v651 = vxor.u32 %v644, 2147483648
    %v652 = vmul.f32 %v651, 1.442695
    %v653 = vpow.pop %v652
    %v654 = vadd.f32 %v653, 1.0
    %v655 = vrcp.pop %v654
    %v656 = vmul.f32 1.0, %v655
    %v657 = vtanh.pop %v644
    %v658 = vmul.f32 %v650, %v457
    %660 = vrot.lane.b32.xlu0 %v657, 64
    %v661 = vpop.permute.xlu0 %660
    %v663 = vmul.f32 %v650, %v661
    %665 = vrot.lane.b32.xlu0 %v663, 64
    %v666 = vpop.permute.xlu0 %665
    %v668 = vadd.f32 %v658, %v666
    %v669 = vtanh.pop %v668
    %671 = vrot.lane.b32.xlu0 %v669, 64
    %v672 = vpop.permute.xlu0 %671
    %v674 = vmul.f32 %v656, %v672
    %v676 = vsel %vm123, %v674, 0
    %678 = vmatprep.subr.mxu0 0.0
    %679 = vmatpush1.msra.mxu0 0.0
    %680 = vmatprep.subr.mxu0 0.0
    %681 = vmatpush1.msra.mxu0 0.0
    %682 = vmatprep.subr.mxu0 0.0
    %683 = vmatpush1.msra.mxu0 0.0
    %684 = vmatprep.subr.mxu0 0.0
    %685 = vmatpush1.msra.mxu0 0.0
    %686 = vmatprep.subr.mxu0 0.0
    %687 = vmatpush1.msra.mxu0 0.0
    %688 = vmatprep.subr.mxu0 0.0
    %689 = vmatpush1.msra.mxu0 0.0
    %690 = vmatprep.subr.mxu0 0.0
    %691 = vmatpush1.msra.mxu0 0.0
    %692 = vmatprep.subr.mxu0 0.0
    %693 = vmatpush1.msra.mxu0 0.0
    %694 = vmatprep.subr.mxu0 0.0
    %695 = vmatpush1.msra.mxu0 %v103
    %696 = vmatprep.subr.mxu0 0.0
    %697 = vmatpush1.msra.mxu0 %v102
    %698 = vmatprep.subr.mxu0 0.0
    %699 = vmatpush1.msra.mxu0 %v101
    %700 = vmatprep.subr.mxu0 0.0
    %701 = vmatpush1.msra.mxu0 %v100
    %702 = vmatprep.subr.mxu0 0.0
    %703 = vmatpush1.msra.mxu0 %v99
    %704 = vmatprep.subr.mxu0 0.0
    %705 = vmatpush1.msra.mxu0 %v98
    %706 = vmatprep.subr.mxu0 0.0
    %707 = vmatpush1.msra.mxu0 %v97
    %708 = vmatprep.subr.mxu0 0.0
    %709 = vmatpush1.msra.mxu0 %v96
    %710 = vmatprep.subr.mxu0 0.0
    %711 = vmatpush2.msra.mxu0 0.0
    %712 = vmatprep.subr.mxu0 0.0
    %713 = vmatpush2.msra.mxu0 0.0
    %714 = vmatprep.subr.mxu0 0.0
    %715 = vmatpush2.msra.mxu0 0.0
    %716 = vmatprep.subr.mxu0 0.0
    %717 = vmatpush2.msra.mxu0 0.0
    %718 = vmatprep.subr.mxu0 0.0
    %719 = vmatpush2.msra.mxu0 0.0
    %720 = vmatprep.subr.mxu0 0.0
    %721 = vmatpush2.msra.mxu0 0.0
    %722 = vmatprep.subr.mxu0 0.0
    %723 = vmatpush2.msra.mxu0 0.0
    %724 = vmatprep.subr.mxu0 0.0
    %725 = vmatpush2.msra.mxu0 0.0
    %726 = vmatprep.subr.mxu0 0.0
    %727 = vmatpush2.msra.mxu0 0.0
    %728 = vmatprep.subr.mxu0 0.0
    %729 = vmatpush2.msra.mxu0 0.0
    %730 = vmatprep.subr.mxu0 0.0
    %731 = vmatpush2.msra.mxu0 0.0
    %732 = vmatprep.subr.mxu0 0.0
    %733 = vmatpush2.msra.mxu0 0.0
    %734 = vmatprep.subr.mxu0 0.0
    %735 = vmatpush2.msra.mxu0 0.0
    %736 = vmatprep.subr.mxu0 0.0
    %737 = vmatpush2.msra.mxu0 0.0
    %738 = vmatprep.subr.mxu0 0.0
    %739 = vmatpush2.msra.mxu0 0.0
    %740 = vmatprep.subr.mxu0 0.0
    %741 = vmatpush2.msra.mxu0 0.0
    %742 = vmatprep.mubr.f32.mxu0 0.0
    %743 = vmatmul.mubr.f32.gmra.mxu0 %v676
    %v744 = vpop.f32.mrf.mxu0
    %v745 = vadd.f32 %v251, %v744
    %v746 = vpop.f32.mrf.mxu0
    %747 = vdwg.mxu0
    %v748 = vsel %vm107, %v745, -3e+38
    %v749 = vsel %vm327, %v748, -inf
    %750 = vmax.xlane.f32.xlu0 %v749
    %v751 = vpop.xlane.xlu0 %750
    %vm752 = vcmp.eq.f32.partialorder %v745, %v751
    %vm753 = vmand %vm107, %vm752
    %v754 = vsel %vm753, %v106, 128
    %v755 = vsel %vm327, %v754, 2147483647
    %v756 = vand.u32 %v755, 65535
    %v757 = vshra.s32 %v755, 16
    %v758 = vcvt.s32.f32 %v756
    %v759 = vcvt.s32.f32 %v757
    %760 = vmin.xlane.f32.xlu0 %v759
    %v761 = vpop.xlane.xlu0 %760
    %vm762 = vcmp.eq.f32.partialorder %v759, %v761
    %v763 = vsel %vm762, %v758, inf
    %764 = vmin.xlane.f32.xlu0 %v763
    %v765 = vpop.xlane.xlu0 %764
    %v766 = vcvt.f32.s32 %v765
    %v767 = vcvt.f32.s32 %v761
    %v768 = vshll.u32 %v767, 16
    %v769 = vadd.s32 %v768, %v766
    %vm770 = vcmp.eq.s32.totalorder %v769, 5
    %vm771 = vmor %vm560, %vm770
    %v772 = vsel %vm350, %v745, 0.0
    %v773 = vsel %vm771, 1, 0
    %vm774 = vcmp.eq.s32.totalorder %v773, 1
    %v775 = vsel %vm774, %v772, %v745
    %s776 = scalar_lea.vmem [#allocation10], 4
    %777 = vst [vmem:[%s776] sm:$0x3] %v775
    %v778 = vcvt.s32.f32 %v769
    %v779 = vmul.f32 %v778, %v114
    %v780 = vmul.f32 %v778, %v118
    %781 = vmatprep.subr.mxu0 0.0
    %782 = vmatpush1.msra.mxu0 0.0
    %783 = vmatprep.subr.mxu0 0.0
    %784 = vmatpush1.msra.mxu0 0.0
    %785 = vmatprep.subr.mxu0 0.0
    %786 = vmatpush1.msra.mxu0 0.0
    %787 = vmatprep.subr.mxu0 0.0
    %788 = vmatpush1.msra.mxu0 0.0
    %789 = vmatprep.subr.mxu0 0.0
    %790 = vmatpush1.msra.mxu0 0.0
    %791 = vmatprep.subr.mxu0 0.0
    %792 = vmatpush1.msra.mxu0 0.0
    %793 = vmatprep.subr.mxu0 0.0
    %794 = vmatpush1.msra.mxu0 0.0
    %795 = vmatprep.subr.mxu0 0.0
    %796 = vmatpush1.msra.mxu0 0.0
    %797 = vmatprep.subr.mxu0 %v94
    %798 = vmatpush1.msra.mxu0 %v93
    %799 = vmatprep.subr.mxu0 %v92
    %800 = vmatpush1.msra.mxu0 %v91
    %801 = vmatprep.subr.mxu0 %v90
    %802 = vmatpush1.msra.mxu0 %v89
    %803 = vmatprep.subr.mxu0 %v88
    %804 = vmatpush1.msra.mxu0 %v87
    %805 = vmatprep.subr.mxu0 %v86
    %806 = vmatpush1.msra.mxu0 %v85
    %807 = vmatprep.subr.mxu0 %v84
    %808 = vmatpush1.msra.mxu0 %v83
    %809 = vmatprep.subr.mxu0 %v82
    %810 = vmatpush1.msra.mxu0 %v81
    %811 = vmatprep.subr.mxu0 %v80
    %812 = vmatpush1.msra.mxu0 %v79
    %813 = vmatprep.subr.mxu0 0.0
    %814 = vmatpush2.msra.mxu0 0.0
    %815 = vmatprep.subr.mxu0 0.0
    %816 = vmatpush2.msra.mxu0 0.0
    %817 = vmatprep.subr.mxu0 0.0
    %818 = vmatpush2.msra.mxu0 0.0
    %819 = vmatprep.subr.mxu0 0.0
    %820 = vmatpush2.msra.mxu0 0.0
    %821 = vmatprep.subr.mxu0 0.0
    %822 = vmatpush2.msra.mxu0 0.0
    %823 = vmatprep.subr.mxu0 0.0
    %824 = vmatpush2.msra.mxu0 0.0
    %825 = vmatprep.subr.mxu0 0.0
    %826 = vmatpush2.msra.mxu0 0.0
    %827 = vmatprep.subr.mxu0 0.0
    %828 = vmatpush2.msra.mxu0 0.0
    %829 = vmatprep.subr.mxu0 0.0
    %830 = vmatpush2.msra.mxu0 0.0
    %831 = vmatprep.subr.mxu0 0.0
    %832 = vmatpush2.msra.mxu0 0.0
    %833 = vmatprep.subr.mxu0 0.0
    %834 = vmatpush2.msra.mxu0 0.0
    %835 = vmatprep.subr.mxu0 0.0
    %836 = vmatpush2.msra.mxu0 0.0
    %837 = vmatprep.subr.mxu0 0.0
    %838 = vmatpush2.msra.mxu0 0.0
    %839 = vmatprep.subr.mxu0 0.0
    %840 = vmatpush2.msra.mxu0 0.0
    %841 = vmatprep.subr.mxu0 0.0
    %842 = vmatpush2.msra.mxu0 0.0
    %843 = vmatprep.subr.mxu0 0.0
    %844 = vmatpush2.msra.mxu0 0.0
    %845 = vmatprep.mubr.f32.mxu0 0.0
    %846 = vmatmul.mubr.f32.gmra.mxu0 %v676
    %v847 = vpop.f32.mrf.mxu0
    %v848 = vadd.f32 0.0, %v847
    %v849 = vpop.f32.mrf.mxu0
    %v850 = vadd.f32 0.0, %v849
    %851 = vdwg.mxu0
    %v852 = vadd.f32 %v779, %v848
    %v853 = vadd.f32 %v780, %v850
    %v854 = vadd.f32 %v852, %v204
    %v855 = vadd.f32 %v853, %v208
    %v856 = vxor.u32 %v854, 2147483648
    %v857 = vmul.f32 %v856, 1.442695
    %v858 = vpow.pop %v857
    %v859 = vadd.f32 %v858, 1.0
    %v860 = vrcp.pop %v859
    %v861 = vmul.f32 1.0, %v860
    %v862 = vxor.u32 %v855, 2147483648
    %v863 = vmul.f32 %v862, 1.442695
    %v864 = vpow.pop %v863
    %v865 = vadd.f32 %v864, 1.0
    %v866 = vrcp.pop %v865
    %v867 = vmul.f32 1.0, %v866
    %v868 = vtanh.pop %v855
    %v869 = vmul.f32 %v861, %v668
    %871 = vrot.lane.b32.xlu0 %v868, 64
    %v872 = vpop.permute.xlu0 %871
    %v874 = vmul.f32 %v861, %v872
    %876 = vrot.lane.b32.xlu0 %v874, 64
    %v877 = vpop.permute.xlu0 %876
    %v879 = vadd.f32 %v869, %v877
    %v880 = vtanh.pop %v879
    %882 = vrot.lane.b32.xlu0 %v880, 64
    %v883 = vpop.permute.xlu0 %882
    %v885 = vmul.f32 %v867, %v883
    %v887 = vsel %vm123, %v885, 0
    %889 = vmatprep.subr.mxu0 0.0
    %890 = vmatpush1.msra.mxu0 0.0
    %891 = vmatprep.subr.mxu0 0.0
    %892 = vmatpush1.msra.mxu0 0.0
    %893 = vmatprep.subr.mxu0 0.0
    %894 = vmatpush1.msra.mxu0 0.0
    %895 = vmatprep.subr.mxu0 0.0
    %896 = vmatpush1.msra.mxu0 0.0
    %897 = vmatprep.subr.mxu0 0.0
    %898 = vmatpush1.msra.mxu0 0.0
    %899 = vmatprep.subr.mxu0 0.0
    %900 = vmatpush1.msra.mxu0 0.0
    %901 = vmatprep.subr.mxu0 0.0
    %902 = vmatpush1.msra.mxu0 0.0
    %903 = vmatprep.subr.mxu0 0.0
    %904 = vmatpush1.msra.mxu0 0.0
    %905 = vmatprep.subr.mxu0 0.0
    %906 = vmatpush1.msra.mxu0 %v103
    %907 = vmatprep.subr.mxu0 0.0
    %908 = vmatpush1.msra.mxu0 %v102
    %909 = vmatprep.subr.mxu0 0.0
    %910 = vmatpush1.msra.mxu0 %v101
    %911 = vmatprep.subr.mxu0 0.0
    %912 = vmatpush1.msra.mxu0 %v100
    %913 = vmatprep.subr.mxu0 0.0
    %914 = vmatpush1.msra.mxu0 %v99
    %915 = vmatprep.subr.mxu0 0.0
    %916 = vmatpush1.msra.mxu0 %v98
    %917 = vmatprep.subr.mxu0 0.0
    %918 = vmatpush1.msra.mxu0 %v97
    %919 = vmatprep.subr.mxu0 0.0
    %920 = vmatpush1.msra.mxu0 %v96
    %921 = vmatprep.subr.mxu0 0.0
    %922 = vmatpush2.msra.mxu0 0.0
    %923 = vmatprep.subr.mxu0 0.0
    %924 = vmatpush2.msra.mxu0 0.0
    %925 = vmatprep.subr.mxu0 0.0
    %926 = vmatpush2.msra.mxu0 0.0
    %927 = vmatprep.subr.mxu0 0.0
    %928 = vmatpush2.msra.mxu0 0.0
    %929 = vmatprep.subr.mxu0 0.0
    %930 = vmatpush2.msra.mxu0 0.0
    %931 = vmatprep.subr.mxu0 0.0
    %932 = vmatpush2.msra.mxu0 0.0
    %933 = vmatprep.subr.mxu0 0.0
    %934 = vmatpush2.msra.mxu0 0.0
    %935 = vmatprep.subr.mxu0 0.0
    %936 = vmatpush2.msra.mxu0 0.0
    %937 = vmatprep.subr.mxu0 0.0
    %938 = vmatpush2.msra.mxu0 0.0
    %939 = vmatprep.subr.mxu0 0.0
    %940 = vmatpush2.msra.mxu0 0.0
    %941 = vmatprep.subr.mxu0 0.0
    %942 = vmatpush2.msra.mxu0 0.0
    %943 = vmatprep.subr.mxu0 0.0
    %944 = vmatpush2.msra.mxu0 0.0
    %945 = vmatprep.subr.mxu0 0.0
    %946 = vmatpush2.msra.mxu0 0.0
    %947 = vmatprep.subr.mxu0 0.0
    %948 = vmatpush2.msra.mxu0 0.0
    %949 = vmatprep.subr.mxu0 0.0
    %950 = vmatpush2.msra.mxu0 0.0
    %951 = vmatprep.subr.mxu0 0.0
    %952 = vmatpush2.msra.mxu0 0.0
    %953 = vmatprep.mubr.f32.mxu0 0.0
    %954 = vmatmul.mubr.f32.gmra.mxu0 %v887
    %v955 = vpop.f32.mrf.mxu0
    %v956 = vadd.f32 %v251, %v955
    %v957 = vpop.f32.mrf.mxu0
    %958 = vdwg.mxu0
    %v959 = vsel %vm107, %v956, -3e+38
    %v960 = vsel %vm327, %v959, -inf
    %961 = vmax.xlane.f32.xlu0 %v960
    %v962 = vpop.xlane.xlu0 %961
    %vm963 = vcmp.eq.f32.partialorder %v956, %v962
    %vm964 = vmand %vm107, %vm963
    %v965 = vsel %vm964, %v106, 128
    %v966 = vsel %vm327, %v965, 2147483647
    %v967 = vand.u32 %v966, 65535
    %v968 = vshra.s32 %v966, 16
    %v969 = vcvt.s32.f32 %v967
    %v970 = vcvt.s32.f32 %v968
    %971 = vmin.xlane.f32.xlu0 %v970
    %v972 = vpop.xlane.xlu0 %971
    %vm973 = vcmp.eq.f32.partialorder %v970, %v972
    %v974 = vsel %vm973, %v969, inf
    %975 = vmin.xlane.f32.xlu0 %v974
    %v976 = vpop.xlane.xlu0 %975
    %v977 = vcvt.f32.s32 %v976
    %v978 = vcvt.f32.s32 %v972
    %v979 = vshll.u32 %v978, 16
    %v980 = vadd.s32 %v979, %v977
    %vm981 = vcmp.eq.s32.totalorder %v980, 5
    %vm982 = vmor %vm771, %vm981
    %v983 = vsel %vm350, %v956, 0.0
    %v984 = vsel %vm982, 1, 0
    %vm985 = vcmp.eq.s32.totalorder %v984, 1
    %v986 = vsel %vm985, %v983, %v956
    %s987 = scalar_lea.vmem [#allocation10], 6
    %988 = vst [vmem:[%s987] sm:$0x3] %v986
    %v989 = vcvt.s32.f32 %v980
    %v990 = vmul.f32 %v989, %v114
    %v991 = vmul.f32 %v989, %v118
    %992 = vmatprep.subr.mxu0 0.0
    %993 = vmatpush1.msra.mxu0 0.0
    %994 = vmatprep.subr.mxu0 0.0
    %995 = vmatpush1.msra.mxu0 0.0
    %996 = vmatprep.subr.mxu0 0.0
    %997 = vmatpush1.msra.mxu0 0.0
    %998 = vmatprep.subr.mxu0 0.0
    %999 = vmatpush1.msra.mxu0 0.0
    %1000 = vmatprep.subr.mxu0 0.0
    %1001 = vmatpush1.msra.mxu0 0.0
    %1002 = vmatprep.subr.mxu0 0.0
    %1003 = vmatpush1.msra.mxu0 0.0
    %1004 = vmatprep.subr.mxu0 0.0
    %1005 = vmatpush1.msra.mxu0 0.0
    %1006 = vmatprep.subr.mxu0 0.0
    %1007 = vmatpush1.msra.mxu0 0.0
    %1008 = vmatprep.subr.mxu0 %v94
    %1009 = vmatpush1.msra.mxu0 %v93
    %1010 = vmatprep.subr.mxu0 %v92
    %1011 = vmatpush1.msra.mxu0 %v91
    %1012 = vmatprep.subr.mxu0 %v90
    %1013 = vmatpush1.msra.mxu0 %v89
    %1014 = vmatprep.subr.mxu0 %v88
    %1015 = vmatpush1.msra.mxu0 %v87
    %1016 = vmatprep.subr.mxu0 %v86
    %1017 = vmatpush1.msra.mxu0 %v85
    %1018 = vmatprep.subr.mxu0 %v84
    %1019 = vmatpush1.msra.mxu0 %v83
    %1020 = vmatprep.subr.mxu0 %v82
    %1021 = vmatpush1.msra.mxu0 %v81
    %1022 = vmatprep.subr.mxu0 %v80
    %1023 = vmatpush1.msra.mxu0 %v79
    %1024 = vmatprep.subr.mxu0 0.0
    %1025 = vmatpush2.msra.mxu0 0.0
    %1026 = vmatprep.subr.mxu0 0.0
    %1027 = vmatpush2.msra.mxu0 0.0
    %1028 = vmatprep.subr.mxu0 0.0
    %1029 = vmatpush2.msra.mxu0 0.0
    %1030 = vmatprep.subr.mxu0 0.0
    %1031 = vmatpush2.msra.mxu0 0.0
    %1032 = vmatprep.subr.mxu0 0.0
    %1033 = vmatpush2.msra.mxu0 0.0
    %1034 = vmatprep.subr.mxu0 0.0
    %1035 = vmatpush2.msra.mxu0 0.0
    %1036 = vmatprep.subr.mxu0 0.0
    %1037 = vmatpush2.msra.mxu0 0.0
    %1038 = vmatprep.subr.mxu0 0.0
    %1039 = vmatpush2.msra.mxu0 0.0
    %1040 = vmatprep.subr.mxu0 0.0
    %1041 = vmatpush2.msra.mxu0 0.0
    %1042 = vmatprep.subr.mxu0 0.0
    %1043 = vmatpush2.msra.mxu0 0.0
    %1044 = vmatprep.subr.mxu0 0.0
    %1045 = vmatpush2.msra.mxu0 0.0
    %1046 = vmatprep.subr.mxu0 0.0
    %1047 = vmatpush2.msra.mxu0 0.0
    %1048 = vmatprep.subr.mxu0 0.0
    %1049 = vmatpush2.msra.mxu0 0.0
    %1050 = vmatprep.subr.mxu0 0.0
    %1051 = vmatpush2.msra.mxu0 0.0
    %1052 = vmatprep.subr.mxu0 0.0
    %1053 = vmatpush2.msra.mxu0 0.0
    %1054 = vmatprep.subr.mxu0 0.0
    %1055 = vmatpush2.msra.mxu0 0.0
    %1056 = vmatprep.mubr.f32.mxu0 0.0
    %1057 = vmatmul.mubr.f32.gmra.mxu0 %v887
    %v1058 = vpop.f32.mrf.mxu0
    %v1059 = vadd.f32 0.0, %v1058
    %v1060 = vpop.f32.mrf.mxu0
    %v1061 = vadd.f32 0.0, %v1060
    %1062 = vdwg.mxu0
    %v1063 = vadd.f32 %v990, %v1059
    %v1064 = vadd.f32 %v991, %v1061
    %v1065 = vadd.f32 %v1063, %v204
    %v1066 = vadd.f32 %v1064, %v208
    %v1067 = vxor.u32 %v1065, 2147483648
    %v1068 = vmul.f32 %v1067, 1.442695
    %v1069 = vpow.pop %v1068
    %v1070 = vadd.f32 %v1069, 1.0
    %v1071 = vrcp.pop %v1070
    %v1072 = vmul.f32 1.0, %v1071
    %v1073 = vxor.u32 %v1066, 2147483648
    %v1074 = vmul.f32 %v1073, 1.442695
    %v1075 = vpow.pop %v1074
    %v1076 = vadd.f32 %v1075, 1.0
    %v1077 = vrcp.pop %v1076
    %v1078 = vmul.f32 1.0, %v1077
    %v1079 = vtanh.pop %v1066
    %v1080 = vmul.f32 %v1072, %v879
    %1082 = vrot.lane.b32.xlu0 %v1079, 64
    %v1083 = vpop.permute.xlu0 %1082
    %v1085 = vmul.f32 %v1072, %v1083
    %1087 = vrot.lane.b32.xlu0 %v1085, 64
    %v1088 = vpop.permute.xlu0 %1087
    %v1090 = vadd.f32 %v1080, %v1088
    %v1091 = vtanh.pop %v1090
    %1093 = vrot.lane.b32.xlu0 %v1091, 64
    %v1094 = vpop.permute.xlu0 %1093
    %v1096 = vmul.f32 %v1078, %v1094
    %v1098 = vsel %vm123, %v1096, 0
    %1100 = vmatprep.subr.mxu0 0.0
    %1101 = vmatpush1.msra.mxu0 0.0
    %1102 = vmatprep.subr.mxu0 0.0
    %1103 = vmatpush1.msra.mxu0 0.0
    %1104 = vmatprep.subr.mxu0 0.0
    %1105 = vmatpush1.msra.mxu0 0.0
    %1106 = vmatprep.subr.mxu0 0.0
    %1107 = vmatpush1.msra.mxu0 0.0
    %1108 = vmatprep.subr.mxu0 0.0
    %1109 = vmatpush1.msra.mxu0 0.0
    %1110 = vmatprep.subr.mxu0 0.0
    %1111 = vmatpush1.msra.mxu0 0.0
    %1112 = vmatprep.subr.mxu0 0.0
    %1113 = vmatpush1.msra.mxu0 0.0
    %1114 = vmatprep.subr.mxu0 0.0
    %1115 = vmatpush1.msra.mxu0 0.0
    %1116 = vmatprep.subr.mxu0 0.0
    %1117 = vmatpush1.msra.mxu0 %v103
    %1118 = vmatprep.subr.mxu0 0.0
    %1119 = vmatpush1.msra.mxu0 %v102
    %1120 = vmatprep.subr.mxu0 0.0
    %1121 = vmatpush1.msra.mxu0 %v101
    %1122 = vmatprep.subr.mxu0 0.0
    %1123 = vmatpush1.msra.mxu0 %v100
    %1124 = vmatprep.subr.mxu0 0.0
    %1125 = vmatpush1.msra.mxu0 %v99
    %1126 = vmatprep.subr.mxu0 0.0
    %1127 = vmatpush1.msra.mxu0 %v98
    %1128 = vmatprep.subr.mxu0 0.0
    %1129 = vmatpush1.msra.mxu0 %v97
    %1130 = vmatprep.subr.mxu0 0.0
    %1131 = vmatpush1.msra.mxu0 %v96
    %1132 = vmatprep.subr.mxu0 0.0
    %1133 = vmatpush2.msra.mxu0 0.0
    %1134 = vmatprep.subr.mxu0 0.0
    %1135 = vmatpush2.msra.mxu0 0.0
    %1136 = vmatprep.subr.mxu0 0.0
    %1137 = vmatpush2.msra.mxu0 0.0
    %1138 = vmatprep.subr.mxu0 0.0
    %1139 = vmatpush2.msra.mxu0 0.0
    %1140 = vmatprep.subr.mxu0 0.0
    %1141 = vmatpush2.msra.mxu0 0.0
    %1142 = vmatprep.subr.mxu0 0.0
    %1143 = vmatpush2.msra.mxu0 0.0
    %1144 = vmatprep.subr.mxu0 0.0
    %1145 = vmatpush2.msra.mxu0 0.0
    %1146 = vmatprep.subr.mxu0 0.0
    %1147 = vmatpush2.msra.mxu0 0.0
    %1148 = vmatprep.subr.mxu0 0.0
    %1149 = vmatpush2.msra.mxu0 0.0
    %1150 = vmatprep.subr.mxu0 0.0
    %1151 = vmatpush2.msra.mxu0 0.0
    %1152 = vmatprep.subr.mxu0 0.0
    %1153 = vmatpush2.msra.mxu0 0.0
    %1154 = vmatprep.subr.mxu0 0.0
    %1155 = vmatpush2.msra.mxu0 0.0
    %1156 = vmatprep.subr.mxu0 0.0
    %1157 = vmatpush2.msra.mxu0 0.0
    %1158 = vmatprep.subr.mxu0 0.0
    %1159 = vmatpush2.msra.mxu0 0.0
    %1160 = vmatprep.subr.mxu0 0.0
    %1161 = vmatpush2.msra.mxu0 0.0
    %1162 = vmatprep.subr.mxu0 0.0
    %1163 = vmatpush2.msra.mxu0 0.0
    %1164 = vmatprep.mubr.f32.mxu0 0.0
    %1165 = vmatmul.mubr.f32.gmra.mxu0 %v1098
    %v1166 = vpop.f32.mrf.mxu0
    %v1167 = vadd.f32 %v251, %v1166
    %v1168 = vpop.f32.mrf.mxu0
    %1169 = vdwg.mxu0
    %v1170 = vsel %vm107, %v1167, -3e+38
    %v1171 = vsel %vm327, %v1170, -inf
    %1172 = vmax.xlane.f32.xlu0 %v1171
    %v1173 = vpop.xlane.xlu0 %1172
    %vm1174 = vcmp.eq.f32.partialorder %v1167, %v1173
    %vm1175 = vmand %vm107, %vm1174
    %v1176 = vsel %vm1175, %v106, 128
    %v1177 = vsel %vm327, %v1176, 2147483647
    %v1178 = vand.u32 %v1177, 65535
    %v1179 = vshra.s32 %v1177, 16
    %v1180 = vcvt.s32.f32 %v1178
    %v1181 = vcvt.s32.f32 %v1179
    %1182 = vmin.xlane.f32.xlu0 %v1181
    %v1183 = vpop.xlane.xlu0 %1182
    %vm1184 = vcmp.eq.f32.partialorder %v1181, %v1183
    %v1185 = vsel %vm1184, %v1180, inf
    %1186 = vmin.xlane.f32.xlu0 %v1185
    %v1187 = vpop.xlane.xlu0 %1186
    %v1188 = vcvt.f32.s32 %v1187
    %v1189 = vcvt.f32.s32 %v1183
    %v1190 = vshll.u32 %v1189, 16
    %v1191 = vadd.s32 %v1190, %v1188
    %vm1192 = vcmp.eq.s32.totalorder %v1191, 5
    %vm1193 = vmor %vm982, %vm1192
    %v1194 = vsel %vm350, %v1167, 0.0
    %v1195 = vsel %vm1193, 1, 0
    %vm1196 = vcmp.eq.s32.totalorder %v1195, 1
    %v1197 = vsel %vm1196, %v1194, %v1167
    %s1198 = scalar_lea.vmem [#allocation10], 8
    %1199 = vst [vmem:[%s1198] sm:$0x3] %v1197
    %v1200 = vcvt.s32.f32 %v1191
    %v1201 = vmul.f32 %v1200, %v114
    %v1202 = vmul.f32 %v1200, %v118
    %1203 = vmatprep.subr.mxu0 0.0
    %1204 = vmatpush1.msra.mxu0 0.0
    %1205 = vmatprep.subr.mxu0 0.0
    %1206 = vmatpush1.msra.mxu0 0.0
    %1207 = vmatprep.subr.mxu0 0.0
    %1208 = vmatpush1.msra.mxu0 0.0
    %1209 = vmatprep.subr.mxu0 0.0
    %1210 = vmatpush1.msra.mxu0 0.0
    %1211 = vmatprep.subr.mxu0 0.0
    %1212 = vmatpush1.msra.mxu0 0.0
    %1213 = vmatprep.subr.mxu0 0.0
    %1214 = vmatpush1.msra.mxu0 0.0
    %1215 = vmatprep.subr.mxu0 0.0
    %1216 = vmatpush1.msra.mxu0 0.0
    %1217 = vmatprep.subr.mxu0 0.0
    %1218 = vmatpush1.msra.mxu0 0.0
    %1219 = vmatprep.subr.mxu0 %v94
    %1220 = vmatpush1.msra.mxu0 %v93
    %1221 = vmatprep.subr.mxu0 %v92
    %1222 = vmatpush1.msra.mxu0 %v91
    %1223 = vmatprep.subr.mxu0 %v90
    %1224 = vmatpush1.msra.mxu0 %v89
    %1225 = vmatprep.subr.mxu0 %v88
    %1226 = vmatpush1.msra.mxu0 %v87
    %1227 = vmatprep.subr.mxu0 %v86
    %1228 = vmatpush1.msra.mxu0 %v85
    %1229 = vmatprep.subr.mxu0 %v84
    %1230 = vmatpush1.msra.mxu0 %v83
    %1231 = vmatprep.subr.mxu0 %v82
    %1232 = vmatpush1.msra.mxu0 %v81
    %1233 = vmatprep.subr.mxu0 %v80
    %1234 = vmatpush1.msra.mxu0 %v79
    %1235 = vmatprep.subr.mxu0 0.0
    %1236 = vmatpush2.msra.mxu0 0.0
    %1237 = vmatprep.subr.mxu0 0.0
    %1238 = vmatpush2.msra.mxu0 0.0
    %1239 = vmatprep.subr.mxu0 0.0
    %1240 = vmatpush2.msra.mxu0 0.0
    %1241 = vmatprep.subr.mxu0 0.0
    %1242 = vmatpush2.msra.mxu0 0.0
    %1243 = vmatprep.subr.mxu0 0.0
    %1244 = vmatpush2.msra.mxu0 0.0
    %1245 = vmatprep.subr.mxu0 0.0
    %1246 = vmatpush2.msra.mxu0 0.0
    %1247 = vmatprep.subr.mxu0 0.0
    %1248 = vmatpush2.msra.mxu0 0.0
    %1249 = vmatprep.subr.mxu0 0.0
    %1250 = vmatpush2.msra.mxu0 0.0
    %1251 = vmatprep.subr.mxu0 0.0
    %1252 = vmatpush2.msra.mxu0 0.0
    %1253 = vmatprep.subr.mxu0 0.0
    %1254 = vmatpush2.msra.mxu0 0.0
    %1255 = vmatprep.subr.mxu0 0.0
    %1256 = vmatpush2.msra.mxu0 0.0
    %1257 = vmatprep.subr.mxu0 0.0
    %1258 = vmatpush2.msra.mxu0 0.0
    %1259 = vmatprep.subr.mxu0 0.0
    %1260 = vmatpush2.msra.mxu0 0.0
    %1261 = vmatprep.subr.mxu0 0.0
    %1262 = vmatpush2.msra.mxu0 0.0
    %1263 = vmatprep.subr.mxu0 0.0
    %1264 = vmatpush2.msra.mxu0 0.0
    %1265 = vmatprep.subr.mxu0 0.0
    %1266 = vmatpush2.msra.mxu0 0.0
    %1267 = vmatprep.mubr.f32.mxu0 0.0
    %1268 = vmatmul.mubr.f32.gmra.mxu0 %v1098
    %v1269 = vpop.f32.mrf.mxu0
    %v1270 = vadd.f32 0.0, %v1269
    %v1271 = vpop.f32.mrf.mxu0
    %v1272 = vadd.f32 0.0, %v1271
    %1273 = vdwg.mxu0
    %v1274 = vadd.f32 %v1201, %v1270
    %v1275 = vadd.f32 %v1202, %v1272
    %v1276 = vadd.f32 %v1274, %v204
    %v1277 = vadd.f32 %v1275, %v208
    %v1278 = vxor.u32 %v1276, 2147483648
    %v1279 = vmul.f32 %v1278, 1.442695
    %v1280 = vpow.pop %v1279
    %v1281 = vadd.f32 %v1280, 1.0
    %v1282 = vrcp.pop %v1281
    %v1283 = vmul.f32 1.0, %v1282
    %v1284 = vxor.u32 %v1277, 2147483648
    %v1285 = vmul.f32 %v1284, 1.442695
    %v1286 = vpow.pop %v1285
    %v1287 = vadd.f32 %v1286, 1.0
    %v1288 = vrcp.pop %v1287
    %v1289 = vmul.f32 1.0, %v1288
    %v1290 = vtanh.pop %v1277
    %v1291 = vmul.f32 %v1283, %v1090
    %1293 = vrot.lane.b32.xlu0 %v1290, 64
    %v1294 = vpop.permute.xlu0 %1293
    %v1296 = vmul.f32 %v1283, %v1294
    %1298 = vrot.lane.b32.xlu0 %v1296, 64
    %v1299 = vpop.permute.xlu0 %1298
    %v1301 = vadd.f32 %v1291, %v1299
    %v1302 = vtanh.pop %v1301
    %1304 = vrot.lane.b32.xlu0 %v1302, 64
    %v1305 = vpop.permute.xlu0 %1304
    %v1307 = vmul.f32 %v1289, %v1305
    %v1309 = vsel %vm123, %v1307, 0
    %1311 = vmatprep.subr.mxu0 0.0
    %1312 = vmatpush1.msra.mxu0 0.0
    %1313 = vmatprep.subr.mxu0 0.0
    %1314 = vmatpush1.msra.mxu0 0.0
    %1315 = vmatprep.subr.mxu0 0.0
    %1316 = vmatpush1.msra.mxu0 0.0
    %1317 = vmatprep.subr.mxu0 0.0
    %1318 = vmatpush1.msra.mxu0 0.0
    %1319 = vmatprep.subr.mxu0 0.0
    %1320 = vmatpush1.msra.mxu0 0.0
    %1321 = vmatprep.subr.mxu0 0.0
    %1322 = vmatpush1.msra.mxu0 0.0
    %1323 = vmatprep.subr.mxu0 0.0
    %1324 = vmatpush1.msra.mxu0 0.0
    %1325 = vmatprep.subr.mxu0 0.0
    %1326 = vmatpush1.msra.mxu0 0.0
    %1327 = vmatprep.subr.mxu0 0.0
    %1328 = vmatpush1.msra.mxu0 %v103
    %1329 = vmatprep.subr.mxu0 0.0
    %1330 = vmatpush1.msra.mxu0 %v102
    %1331 = vmatprep.subr.mxu0 0.0
    %1332 = vmatpush1.msra.mxu0 %v101
    %1333 = vmatprep.subr.mxu0 0.0
    %1334 = vmatpush1.msra.mxu0 %v100
    %1335 = vmatprep.subr.mxu0 0.0
    %1336 = vmatpush1.msra.mxu0 %v99
    %1337 = vmatprep.subr.mxu0 0.0
    %1338 = vmatpush1.msra.mxu0 %v98
    %1339 = vmatprep.subr.mxu0 0.0
    %1340 = vmatpush1.msra.mxu0 %v97
    %1341 = vmatprep.subr.mxu0 0.0
    %1342 = vmatpush1.msra.mxu0 %v96
    %1343 = vmatprep.subr.mxu0 0.0
    %1344 = vmatpush2.msra.mxu0 0.0
    %1345 = vmatprep.subr.mxu0 0.0
    %1346 = vmatpush2.msra.mxu0 0.0
    %1347 = vmatprep.subr.mxu0 0.0
    %1348 = vmatpush2.msra.mxu0 0.0
    %1349 = vmatprep.subr.mxu0 0.0
    %1350 = vmatpush2.msra.mxu0 0.0
    %1351 = vmatprep.subr.mxu0 0.0
    %1352 = vmatpush2.msra.mxu0 0.0
    %1353 = vmatprep.subr.mxu0 0.0
    %1354 = vmatpush2.msra.mxu0 0.0
    %1355 = vmatprep.subr.mxu0 0.0
    %1356 = vmatpush2.msra.mxu0 0.0
    %1357 = vmatprep.subr.mxu0 0.0
    %1358 = vmatpush2.msra.mxu0 0.0
    %1359 = vmatprep.subr.mxu0 0.0
    %1360 = vmatpush2.msra.mxu0 0.0
    %1361 = vmatprep.subr.mxu0 0.0
    %1362 = vmatpush2.msra.mxu0 0.0
    %1363 = vmatprep.subr.mxu0 0.0
    %1364 = vmatpush2.msra.mxu0 0.0
    %1365 = vmatprep.subr.mxu0 0.0
    %1366 = vmatpush2.msra.mxu0 0.0
    %1367 = vmatprep.subr.mxu0 0.0
    %1368 = vmatpush2.msra.mxu0 0.0
    %1369 = vmatprep.subr.mxu0 0.0
    %1370 = vmatpush2.msra.mxu0 0.0
    %1371 = vmatprep.subr.mxu0 0.0
    %1372 = vmatpush2.msra.mxu0 0.0
    %1373 = vmatprep.subr.mxu0 0.0
    %1374 = vmatpush2.msra.mxu0 0.0
    %1375 = vmatprep.mubr.f32.mxu0 0.0
    %1376 = vmatmul.mubr.f32.gmra.mxu0 %v1309
    %v1377 = vpop.f32.mrf.mxu0
    %v1378 = vadd.f32 %v251, %v1377
    %v1379 = vpop.f32.mrf.mxu0
    %1380 = vdwg.mxu0
    %v1381 = vsel %vm107, %v1378, -3e+38
    %v1382 = vsel %vm327, %v1381, -inf
    %1383 = vmax.xlane.f32.xlu0 %v1382
    %v1384 = vpop.xlane.xlu0 %1383
    %vm1385 = vcmp.eq.f32.partialorder %v1378, %v1384
    %vm1386 = vmand %vm107, %vm1385
    %v1387 = vsel %vm1386, %v106, 128
    %v1388 = vsel %vm327, %v1387, 2147483647
    %v1389 = vand.u32 %v1388, 65535
    %v1390 = vshra.s32 %v1388, 16
    %v1391 = vcvt.s32.f32 %v1389
    %v1392 = vcvt.s32.f32 %v1390
    %1393 = vmin.xlane.f32.xlu0 %v1392
    %v1394 = vpop.xlane.xlu0 %1393
    %vm1395 = vcmp.eq.f32.partialorder %v1392, %v1394
    %v1396 = vsel %vm1395, %v1391, inf
    %1397 = vmin.xlane.f32.xlu0 %v1396
    %v1398 = vpop.xlane.xlu0 %1397
    %v1399 = vcvt.f32.s32 %v1398
    %v1400 = vcvt.f32.s32 %v1394
    %v1401 = vshll.u32 %v1400, 16
    %v1402 = vadd.s32 %v1401, %v1399
    %vm1403 = vcmp.eq.s32.totalorder %v1402, 5
    %vm1404 = vmor %vm1193, %vm1403
    %v1405 = vsel %vm350, %v1378, 0.0
    %v1406 = vsel %vm1404, 1, 0
    %vm1407 = vcmp.eq.s32.totalorder %v1406, 1
    %v1408 = vsel %vm1407, %v1405, %v1378
    %s1409 = scalar_lea.vmem [#allocation10], 10
    %1410 = vst [vmem:[%s1409] sm:$0x3] %v1408
    // Predicated region
    $region46: #{tpu_custom_call.1} parent=1 // pred_check
      _
    $region47: #{tpu_custom_call.1} parent=1 // pred_check_branch
      %1412 = sbr.rel (0) target = $region49
    $region48: #{tpu_custom_call.1} parent=1 // pred_region
      %s1414 = ssub.s32 192, 192
      %1415 = vsyncadd [#allocation4], %s1414
      %s1416 = sshll.u32 [#allocation10], 4
      %s1417 = int_to_ptr.vmem [resolvable:$true] %s1416
      %1422 = dma.vmem_to_hbm [thread:$0]  %s1417, 192, %s7, [#allocation4], 32, 32, 2
    $region49: #{tpu_custom_call.1} parent=1 // pred_fallthru
      _
    // Predicated region
    $region50: #{tpu_custom_call.1} parent=1 // pred_check
      _
    $region51: #{tpu_custom_call.1} parent=1 // pred_check_branch
      %1424 = sbr.rel (0) target = $region53
    $region52: #{tpu_custom_call.1} parent=1 // pred_region
      %1425 = dma.done [#allocation4], 192
    $region53: #{tpu_custom_call.1} parent=1 // pred_fallthru
      _
    %1426 = vsyncpa [#allocation3], 1
    %1427 = vsyncpa [#allocation6], 1
    %1428 = vsyncpa [#allocation9], 1
    %1429 = vsyncpa [#allocation4], 1

</llo_original>
